<compile_context>
chip_gen: v6e
topology: v6e:2x2x1
jax: 0.10.0
libtpu: 0.0.40
codegen_flags: <defaults>
</compile_context>

<pallas_src>
import functools
import math
from typing import NamedTuple, Optional

import jax
import jax.numpy as jnp
from jax import lax
from jax.experimental import pallas as pl
from jax.experimental.pallas import tpu as pltpu


# ---------------------------------------------------------------------------
# Kernel body
# ---------------------------------------------------------------------------
def _fused_cross_attention_kernel(x1_ref, x2_ref, wq_ref, wk_ref, wv_ref,
                                  out_ref, scores_ref, *, n_k, scale):
    step = pl.program_id(1)          # phase index (program_id(0) is the core axis)

    # ---- Phase 1: accumulate attn_scores = (x1 Wq)(x2 Wk)^T over d_kq tiles --
    @pl.when(step == 0)
    def _():
        scores_ref[...] = jnp.zeros_like(scores_ref)

    @pl.when(step < n_k)
    def _():
        q_chunk = jnp.dot(x1_ref[...], wq_ref[0],
                          preferred_element_type=jnp.float32)            # (B, tk)
        k_chunk = jnp.dot(x2_ref[...], wk_ref[0],
                          preferred_element_type=jnp.float32)            # (B, tk)
        scores_ref[...] += lax.dot_general(                              # (B, B)
            q_chunk, k_chunk, (((1,), (1,)), ((), ())),
            preferred_element_type=jnp.float32)

    # ---- Softmax once, in place, on the last reduction step ------------------
    @pl.when(step == n_k - 1)
    def _():
        s = scores_ref[...] * scale
        m = jnp.max(s, axis=-1, keepdims=True)
        e = jnp.exp(s - m)
        denom = jnp.sum(e, axis=-1, keepdims=True)
        scores_ref[...] = e * pl.reciprocal(denom, approx=True)

    # ---- Phase 2: context[:, j-tile] = attn @ (x2 Wv[:, j-tile]) -------------
    @pl.when(step >= n_k - 1)
    def _():
        v_chunk = jnp.dot(x2_ref[...], wv_ref[0],
                          preferred_element_type=jnp.float32)            # (B, tv)
        out_ref[...] = jnp.dot(scores_ref[...], v_chunk,
                               preferred_element_type=jnp.float32
                               ).astype(out_ref.dtype)


# ---------------------------------------------------------------------------
# Sizing / hardware helpers
# ---------------------------------------------------------------------------
def _round_up(x, m):
    return ((x + m - 1) // m) * m


def _vmem_capacity_bytes():
    try:
        cap = getattr(pltpu.get_tpu_info(), "vmem_capacity_bytes", None)
        if cap:
            return int(cap)
    except Exception:
        pass
    # Review item: if the query fails, don't silently drop v5e/v6e (128 MiB
    # parts) to v7x-sized tiles.
    return 128 * 1024 * 1024


def _num_tensorcores():
    """Best-effort TensorCores-per-chip query (v7x = 2); defaults to 1."""
    try:
        info = pltpu.get_tpu_info()
        for attr in ("num_tensorcores", "tensorcore_count", "tensorcores_per_chip",
                     "num_cores", "num_cores_per_chip", "cores_per_chip"):
            n = getattr(info, attr, None)
            if isinstance(n, int) and n in (1, 2):
                return n
    except Exception:
        pass
    return 1


def _select_weight_tile(d_in, d_kq, d_v, itemsize, vmem_cap, max_tile=None):
    """Largest 128-aligned weight column tile whose double-buffered streams fit
    in ~80% of VMEM (footprint-based, per review; no hard-coded caps)."""
    d_kq_128 = _round_up(d_kq, 128)
    d_v_128 = _round_up(d_v, 128)
    budget = int(0.80 * vmem_cap)
    # Double-buffered Wq + Wk + Wv column tiles dominate the footprint.
    denom = 2 * itemsize * (d_in + d_kq_128 + d_kq_128)
    t = (budget // max(denom, 1)) // 128 * 128
    t = max(128, min(t, 2048))
    if max_tile is not None:
        t = max(128, min(t, (max_tile // 128) * 128))
    return min(t, d_kq_128), min(t, d_v_128)


# ---------------------------------------------------------------------------
# One-time parameter preparation (load-time, OUTSIDE the per-call path)
# ---------------------------------------------------------------------------
class CrossAttentionParams(NamedTuple):
    wq_tiles: jax.Array    # (n_k, d_in,   tk)  compute dtype, tile-major
    wk_tiles: jax.Array    # (n_k, d_kq_p, tk)
    wv_tiles: jax.Array    # (n_v, d_kq_p, tv)
    d_in: int
    d_kq: int
    d_v: int
    d_kq_p: int
    d_v_p: int
    tk: int
    tv: int


def prepare_cross_attention_params(w_query, w_key, w_value, *,
                                   compute_dtype=jnp.bfloat16,
                                   max_tile: Optional[int] = None):
    """Cast (once), zero-pad to tile-aligned dims (handles d_kq = 8640), and
    repack W_query/W_key/W_value tile-major so every per-step weight DMA is a
    single contiguous block.  Call once at parameter-load time."""
    d_in, d_kq = w_query.shape
    assert w_key.shape == (d_kq, d_kq), "W_key must be (d_out_kq, d_out_kq)"
    assert w_value.shape[0] == d_kq, "W_value rows must equal d_out_kq"
    d_v = w_value.shape[1]

    itemsize = jnp.dtype(compute_dtype).itemsize
    tk, tv = _select_weight_tile(d_in, d_kq, d_v, itemsize,
                                 _vmem_capacity_bytes(), max_tile)
    d_kq_p = _round_up(d_kq, tk)
    d_v_p = _round_up(d_v, tv)
    n_k = d_kq_p // tk
    n_v = d_v_p // tv

    wq = jnp.pad(w_query.astype(compute_dtype), ((0, 0), (0, d_kq_p - d_kq)))
    wk = jnp.pad(w_key.astype(compute_dtype),
                 ((0, d_kq_p - d_kq), (0, d_kq_p - d_kq)))
    wv = jnp.pad(w_value.astype(compute_dtype),
                 ((0, d_kq_p - d_kq), (0, d_v_p - d_v)))

    wq_tiles = wq.reshape(d_in, n_k, tk).transpose(1, 0, 2)      # (n_k, d_in,   tk)
    wk_tiles = wk.reshape(d_kq_p, n_k, tk).transpose(1, 0, 2)    # (n_k, d_kq_p, tk)
    wv_tiles = wv.reshape(d_kq_p, n_v, tv).transpose(1, 0, 2)    # (n_v, d_kq_p, tv)
    return CrossAttentionParams(wq_tiles, wk_tiles, wv_tiles,
                                d_in, d_kq, d_v, d_kq_p, d_v_p, tk, tv)


# ---------------------------------------------------------------------------
# Per-call wrapper
# ---------------------------------------------------------------------------
def cross_attention(x1, x2, params: CrossAttentionParams, *,
                    num_cores: Optional[int] = None):
    p = params
    B = x2.shape[0]
    x2_flat = x2.reshape(B, -1)
    assert x1.shape == (B, p.d_in)
    assert x2_flat.shape[1] == p.d_kq == p.d_v, "C*H*W*P must equal d_out_kq/d_out_v"

    compute_dtype = p.wk_tiles.dtype
    itemsize = jnp.dtype(compute_dtype).itemsize
    x1_c = x1.astype(compute_dtype)                        # tiny activations only
    x2_c = x2_flat.astype(compute_dtype)
    if p.d_kq_p > p.d_kq:
        x2_c = jnp.pad(x2_c, ((0, 0), (0, p.d_kq_p - p.d_kq)))

    n_k = p.d_kq_p // p.tk
    n_v = p.d_v_p // p.tv
    scale = 1.0 / math.sqrt(float(p.d_kq))                 # original (unpadded) d_kq

    # v7x: split the d_v output tiles across the 2 TensorCores; scores are
    # recomputed per core (only the Wq/Wk stream is duplicated).  Single-TC
    # chips (v5e/v6e) keep num_cores == 1.
    if num_cores is None:
        num_cores = _num_tensorcores()
    num_cores = max(1, min(int(num_cores), 2))
    if n_v % num_cores != 0:
        num_cores = 1
    n_v_pc = n_v // num_cores
    steps = n_k + n_v_pc - 1

    # Explicit VMEM limit derived from the actual double-buffered footprint.
    vmem_cap = _vmem_capacity_bytes()
    weight_db = 2 * itemsize * (p.d_in * p.tk + p.d_kq_p * p.tk + p.d_kq_p * p.tv)
    residents = itemsize * (B * p.d_in + B * p.d_kq_p)
    est = weight_db + 2 * residents + 2 * 4 * B * p.tv + 4 * max(B, 8) * max(B, 128)
    vmem_limit = int(min(0.9 * vmem_cap, max(est + (8 << 20), 32 << 20)))

    cost = pl.CostEstimate(
        flops=int(2 * B * (num_cores * (p.d_in + p.d_kq_p) * p.d_kq_p
                           + p.d_kq_p * p.d_v_p
                           + B * (num_cores * p.d_kq_p + p.d_v_p))),
        transcendentals=int(num_cores * B * B),
        bytes_accessed=int(itemsize * (num_cores * (p.wq_tiles.size + p.wk_tiles.size
                                                    + x1_c.size + x2_c.size)
                                       + p.wv_tiles.size) + 4 * B * p.d_v_p),
    )

    kernel = functools.partial(_fused_cross_attention_kernel, n_k=n_k, scale=scale)

    def resident_spec(shape, single_buffer):
        # Block index never changes -> a second pipeline buffer is never used.
        if single_buffer:
            return pl.BlockSpec(shape, lambda c, s: (0, 0),
                                pipeline_mode=pl.Buffered(1))
        return pl.BlockSpec(shape, lambda c, s: (0, 0))

    def build(single_buffer_residents):
        return pl.pallas_call(
            kernel,
            out_shape=jax.ShapeDtypeStruct((B, p.d_v_p), jnp.float32),
            grid_spec=pltpu.PrefetchScalarGridSpec(
                num_scalar_prefetch=0,
                grid=(num_cores, steps),
                in_specs=[
                    resident_spec((B, p.d_in), single_buffer_residents),    # x1
                    resident_spec((B, p.d_kq_p), single_buffer_residents),  # x2_flat
                    pl.BlockSpec((1, p.d_in, p.tk),                         # Wq tile
                                 lambda c, s: (jnp.minimum(s, n_k - 1), 0, 0)),
                    pl.BlockSpec((1, p.d_kq_p, p.tk),                       # Wk tile
                                 lambda c, s: (jnp.minimum(s, n_k - 1), 0, 0)),
                    pl.BlockSpec((1, p.d_kq_p, p.tv),                       # Wv tile
                                 lambda c, s: (c * n_v_pc
                                               + jnp.maximum(s - (n_k - 1), 0), 0, 0)),
                ],
                out_specs=pl.BlockSpec(
                    (B, p.tv),
                    lambda c, s: (0, c * n_v_pc + jnp.maximum(s - (n_k - 1), 0))),
                scratch_shapes=[pltpu.VMEM((B, B), jnp.float32)],            # attn scores
            ),
            compiler_params=pltpu.CompilerParams(
                dimension_semantics=("parallel", "arbitrary"),
                vmem_limit_bytes=vmem_limit,
            ),
            cost_estimate=cost,
        )

    try:
        ctx = build(True)(x1_c, x2_c, p.wq_tiles, p.wk_tiles, p.wv_tiles)
    except Exception:
        # pl.Buffered(1) on the resident blocks is a pure VMEM saving; fall back
        # to default double-buffering if this JAX build rejects it.
        ctx = build(False)(x1_c, x2_c, p.wq_tiles, p.wk_tiles, p.wv_tiles)

    return ctx[:, :p.d_v].reshape(x2.shape)


# ---------------------------------------------------------------------------
# Pure-JAX reference (mirrors the PyTorch forward, f32 accumulation)
# ---------------------------------------------------------------------------
def cross_attention_ref(x1, x2, w_query, w_key, w_value):
    B = x2.shape[0]
    d_kq = w_query.shape[1]
    x2f = x2.reshape(B, -1)
    q = jnp.dot(x1, w_query, preferred_element_type=jnp.float32)
    k = jnp.dot(x2f, w_key, preferred_element_type=jnp.float32)
    v = jnp.dot(x2f, w_value, preferred_element_type=jnp.float32)
    s = jnp.dot(q, k.T, preferred_element_type=jnp.float32) / (d_kq ** 0.5)
    w = jax.nn.softmax(s, axis=-1)
    return jnp.dot(w, v, preferred_element_type=jnp.float32).reshape(x2.shape)


# ---------------------------------------------------------------------------
# Self-test
# ---------------------------------------------------------------------------
def _run_case(key, *, B, C, H, W, P, d_in, max_tile, num_cores, label):
    k1, k2, kq, kk, kv = jax.random.split(key, 5)
    d_kq = C * H * W * P
    d_v = d_kq

    # Modest input scale keeps the softmax away from saturation so the
    # bf16-vs-bf16 comparison below stays meaningful.
    x1 = 0.25 * jax.random.normal(k1, (B, d_in), dtype=jnp.float32)
    x2 = 0.25 * jax.random.normal(k2, (B, C, H, W, P), dtype=jnp.float32)
    w_query = jax.random.uniform(kq, (d_in, d_kq), dtype=jnp.float32)
    w_key = jax.random.uniform(kk, (d_kq, d_kq), dtype=jnp.float32)
    w_value = jax.random.uniform(kv, (d_kq, d_v), dtype=jnp.float32)

    # One-time prep (cast + pad + tile-major repack); done OUTSIDE the call path.
    params = prepare_cross_attention_params(w_query, w_key, w_value,
                                            max_tile=max_tile)

    out = jax.block_until_ready(cross_attention(x1, x2, params,
                                                num_cores=num_cores))

    bf = jnp.bfloat16
    ref = cross_attention_ref(x1.astype(bf), x2.astype(bf), w_query.astype(bf),
                              w_key.astype(bf), w_value.astype(bf))
    assert out.shape == (B, C, H, W, P)
    assert jnp.allclose(out, ref, rtol=2e-2, atol=2e-2), (
        f"{label}: max abs diff {float(jnp.max(jnp.abs(out - ref)))}")


if __name__ == "__main__":
    key = jax.random.PRNGKey(0)
    k_a, k_b, k_c = jax.random.split(key, 3)

    # Case 1: d_kq = C*H*W*P = 512 (128-divisible).  max_tile=128 forces a
    # multi-step accumulate -> softmax -> context pipeline (n_k = n_v = 4).
    _run_case(k_a, B=2, C=2, H=4, W=4, P=16, d_in=32,
              max_tile=128, num_cores=1, label="single-core")

    # Same case through the v7x dual-TensorCore code path (leading 'parallel'
    # core axis).  On single-TC chips it runs sequentially and stays correct.
    _run_case(k_b, B=2, C=2, H=4, W=4, P=16, d_in=32,
              max_tile=128, num_cores=2, label="dual-core")

    # Case 2: d_kq = 270 (not 128-divisible, like the spec's 8640) exercises the
    # zero-padding path; core count auto-detected (falls back to 1 if n_v does
    # not split evenly).
    _run_case(k_c, B=2, C=2, H=3, W=5, P=9, d_in=32,
              max_tile=128, num_cores=None, label="padded")

    print("KERNEL_OK")
</pallas_src>

<mosaic_0001>
module attributes {stable_mosaic.version = 11 : i64} {
  func.func @_fused_cross_attention_kernel(%arg0: i32, %arg1: i32, %arg2: memref<2x32xbf16, #tpu.memory_space<vmem>>, %arg3: memref<2x512xbf16, #tpu.memory_space<vmem>>, %arg4: memref<1x32x128xbf16, #tpu.memory_space<vmem>>, %arg5: memref<1x512x128xbf16, #tpu.memory_space<vmem>>, %arg6: memref<1x512x128xbf16, #tpu.memory_space<vmem>>, %arg7: memref<2x128xf32, #tpu.memory_space<vmem>>, %arg8: memref<2x2xf32, #tpu.memory_space<vmem>>) attributes {dimension_semantics = [#tpu.dimension_semantics<parallel>, #tpu.dimension_semantics<arbitrary>], iteration_bounds = array<i64: 1, 7>, scalar_prefetch = 0 : i64, scratch_operands = 1 : i64, tpu.core_type = #tpu.core_type<tc>, window_params = [{pipeline_mode = #tpu.pipeline_mode<synchronous>, transform_indices = @transform_0, window_bounds = array<i64: 2, 32>}, {pipeline_mode = #tpu.pipeline_mode<synchronous>, transform_indices = @transform_1, window_bounds = array<i64: 2, 512>}, {transform_indices = @transform_2, window_bounds = array<i64: 1, 32, 128>}, {transform_indices = @transform_3, window_bounds = array<i64: 1, 512, 128>}, {transform_indices = @transform_4, window_bounds = array<i64: 1, 512, 128>}, {transform_indices = @transform_5, window_bounds = array<i64: 2, 128>}]} {
    %c0_i32 = arith.constant 0 : i32
    %0 = arith.cmpi eq, %arg1, %c0_i32 : i32
    %1 = arith.extui %0 : i1 to i32
    %c0_i32_0 = arith.constant 0 : i32
    %2 = arith.cmpi ne, %1, %c0_i32_0 : i32
    scf.if %2 {
      %cst = arith.constant 0.000000e+00 : f32
      %12 = vector.broadcast %cst : f32 to vector<2x2xf32>
      %c0 = arith.constant 0 : index
      %c0_5 = arith.constant 0 : index
      %13 = vector.load %arg8[%c0, %c0_5] : memref<2x2xf32, #tpu.memory_space<vmem>>, vector<2x2xf32>
      tpu.vector_store %arg8[%c0, %c0_5], %12 {strides = array<i32>} : memref<2x2xf32, #tpu.memory_space<vmem>>, vector<2x2xf32>,
    } else {
    }
    %c4_i32 = arith.constant 4 : i32
    %3 = arith.cmpi slt, %arg1, %c4_i32 : i32
    %4 = arith.extui %3 : i1 to i32
    %c0_i32_1 = arith.constant 0 : i32
    %5 = arith.cmpi ne, %4, %c0_i32_1 : i32
    scf.if %5 {
      %c0 = arith.constant 0 : index
      %c0_5 = arith.constant 0 : index
      %12 = vector.load %arg2[%c0, %c0_5] : memref<2x32xbf16, #tpu.memory_space<vmem>>, vector<2x32xbf16>
      %c0_6 = arith.constant 0 : index
      %c0_7 = arith.constant 0 : index
      %c0_8 = arith.constant 0 : index
      %13 = vector.load %arg4[%c0_6, %c0_7, %c0_8] : memref<1x32x128xbf16, #tpu.memory_space<vmem>>, vector<1x32x128xbf16>
      %14 = vector.shape_cast %13 : vector<1x32x128xbf16> to vector<32x128xbf16>
      %cst = arith.constant dense<0.000000e+00> : vector<2x128xf32>
      %15 = tpu.matmul %12, %14, %cst {dimension_numbers = #tpu.dot_dimension_numbers<[1], [0], [0], [1], [0, 0, 1, 1], [], []>} : vector<2x32xbf16>, vector<32x128xbf16>, vector<2x128xf32> -> vector<2x128xf32>
      %c0_9 = arith.constant 0 : index
      %c0_10 = arith.constant 0 : index
      %16 = vector.load %arg3[%c0_9, %c0_10] : memref<2x512xbf16, #tpu.memory_space<vmem>>, vector<2x512xbf16>
      %c0_11 = arith.constant 0 : index
      %c0_12 = arith.constant 0 : index
      %c0_13 = arith.constant 0 : index
      %17 = vector.load %arg5[%c0_11, %c0_12, %c0_13] : memref<1x512x128xbf16, #tpu.memory_space<vmem>>, vector<1x512x128xbf16>
      %18 = vector.shape_cast %17 : vector<1x512x128xbf16> to vector<512x128xbf16>
      %cst_14 = arith.constant dense<0.000000e+00> : vector<2x128xf32>
      %19 = tpu.matmul %16, %18, %cst_14 {dimension_numbers = #tpu.dot_dimension_numbers<[1], [0], [0], [1], [0, 0, 1, 1], [], []>} : vector<2x512xbf16>, vector<512x128xbf16>, vector<2x128xf32> -> vector<2x128xf32>
      %c0_15 = arith.constant 0 : index
      %c0_16 = arith.constant 0 : index
      %20 = vector.load %arg8[%c0_15, %c0_16] : memref<2x2xf32, #tpu.memory_space<vmem>>, vector<2x2xf32>
      %cst_17 = arith.constant dense<0.000000e+00> : vector<2x2xf32>
      %21 = tpu.matmul %15, %19, %cst_17 {dimension_numbers = #tpu.dot_dimension_numbers<[1], [1], [0], [0], [0, 0, 1, 0], [], []>} : vector<2x128xf32>, vector<2x128xf32>, vector<2x2xf32> -> vector<2x2xf32>
      %22 = arith.addf %20, %21 : vector<2x2xf32>
      %c0_18 = arith.constant 0 : index
      %c0_19 = arith.constant 0 : index
      %23 = vector.load %arg8[%c0_18, %c0_19] : memref<2x2xf32, #tpu.memory_space<vmem>>, vector<2x2xf32>
      tpu.vector_store %arg8[%c0_18, %c0_19], %22 {strides = array<i32>} : memref<2x2xf32, #tpu.memory_space<vmem>>, vector<2x2xf32>,
    } else {
    }
    %c3_i32 = arith.constant 3 : i32
    %6 = arith.cmpi eq, %arg1, %c3_i32 : i32
    %7 = arith.extui %6 : i1 to i32
    %c0_i32_2 = arith.constant 0 : i32
    %8 = arith.cmpi ne, %7, %c0_i32_2 : i32
    scf.if %8 {
      %c0 = arith.constant 0 : index
      %c0_5 = arith.constant 0 : index
      %12 = vector.load %arg8[%c0, %c0_5] : memref<2x2xf32, #tpu.memory_space<vmem>>, vector<2x2xf32>
      %cst = arith.constant 0.0441941731 : f32
      %13 = vector.broadcast %cst : f32 to vector<2x2xf32>
      %14 = arith.mulf %12, %13 : vector<2x2xf32>
      %cst_6 = arith.constant dense<0xFF800000> : vector<2xf32>
      %15 = vector.multi_reduction <maximumf>, %14, %cst_6 [1] : vector<2x2xf32> to vector<2xf32>
      %16 = vector.shape_cast %15 : vector<2xf32> to vector<2x1xf32>
      %17 = vector.broadcast %16 : vector<2x1xf32> to vector<2x2xf32>
      %18 = arith.subf %14, %17 : vector<2x2xf32>
      %19 = math.exp %18 : vector<2x2xf32>
      %cst_7 = arith.constant dense<0.000000e+00> : vector<2xf32>
      %20 = vector.multi_reduction <add>, %19, %cst_7 [1] : vector<2x2xf32> to vector<2xf32>
      %21 = vector.shape_cast %20 : vector<2xf32> to vector<2x1xf32>
      %22 = tpu.reciprocal %21 {approx = true} : vector<2x1xf32> -> vector<2x1xf32>
      %23 = vector.broadcast %22 : vector<2x1xf32> to vector<2x2xf32>
      %24 = arith.mulf %19, %23 : vector<2x2xf32>
      %c0_8 = arith.constant 0 : index
      %c0_9 = arith.constant 0 : index
      %25 = vector.load %arg8[%c0_8, %c0_9] : memref<2x2xf32, #tpu.memory_space<vmem>>, vector<2x2xf32>
      tpu.vector_store %arg8[%c0_8, %c0_9], %24 {strides = array<i32>} : memref<2x2xf32, #tpu.memory_space<vmem>>, vector<2x2xf32>,
    } else {
    }
    %c3_i32_3 = arith.constant 3 : i32
    %9 = arith.cmpi sge, %arg1, %c3_i32_3 : i32
    %10 = arith.extui %9 : i1 to i32
    %c0_i32_4 = arith.constant 0 : i32
    %11 = arith.cmpi ne, %10, %c0_i32_4 : i32
    scf.if %11 {
      %c0 = arith.constant 0 : index
      %c0_5 = arith.constant 0 : index
      %12 = vector.load %arg3[%c0, %c0_5] : memref<2x512xbf16, #tpu.memory_space<vmem>>, vector<2x512xbf16>
      %c0_6 = arith.constant 0 : index
      %c0_7 = arith.constant 0 : index
      %c0_8 = arith.constant 0 : index
      %13 = vector.load %arg6[%c0_6, %c0_7, %c0_8] : memref<1x512x128xbf16, #tpu.memory_space<vmem>>, vector<1x512x128xbf16>
      %14 = vector.shape_cast %13 : vector<1x512x128xbf16> to vector<512x128xbf16>
      %cst = arith.constant dense<0.000000e+00> : vector<2x128xf32>
      %15 = tpu.matmul %12, %14, %cst {dimension_numbers = #tpu.dot_dimension_numbers<[1], [0], [0], [1], [0, 0, 1, 1], [], []>} : vector<2x512xbf16>, vector<512x128xbf16>, vector<2x128xf32> -> vector<2x128xf32>
      %c0_9 = arith.constant 0 : index
      %c0_10 = arith.constant 0 : index
      %16 = vector.load %arg8[%c0_9, %c0_10] : memref<2x2xf32, #tpu.memory_space<vmem>>, vector<2x2xf32>
      %cst_11 = arith.constant dense<0.000000e+00> : vector<2x128xf32>
      %17 = tpu.matmul %16, %15, %cst_11 {dimension_numbers = #tpu.dot_dimension_numbers<[1], [0], [0], [1], [0, 0, 1, 1], [], []>} : vector<2x2xf32>, vector<2x128xf32>, vector<2x128xf32> -> vector<2x128xf32>
      %c0_12 = arith.constant 0 : index
      %c0_13 = arith.constant 0 : index
      %18 = vector.load %arg7[%c0_12, %c0_13] : memref<2x128xf32, #tpu.memory_space<vmem>>, vector<2x128xf32>
      tpu.vector_store %arg7[%c0_12, %c0_13], %17 {strides = array<i32>} : memref<2x128xf32, #tpu.memory_space<vmem>>, vector<2x128xf32>,
    } else {
    }
    return
  }
  func.func @transform_0(%arg0: i32, %arg1: i32) -> (i32, i32) {
    %c0_i32 = arith.constant 0 : i32
    %c0_i32_0 = arith.constant 0 : i32
    %c0_i32_1 = arith.constant 0 : i32
    return %c0_i32, %c0_i32_0 : i32, i32
  }
  func.func @transform_1(%arg0: i32, %arg1: i32) -> (i32, i32) {
    %c0_i32 = arith.constant 0 : i32
    %c0_i32_0 = arith.constant 0 : i32
    %c0_i32_1 = arith.constant 0 : i32
    return %c0_i32, %c0_i32_0 : i32, i32
  }
  func.func @transform_2(%arg0: i32, %arg1: i32) -> (i32, i32, i32) {
    %c3_i32 = arith.constant 3 : i32
    %0 = arith.minsi %arg1, %c3_i32 : i32
    %c0_i32 = arith.constant 0 : i32
    %c0_i32_0 = arith.constant 0 : i32
    %c0_i32_1 = arith.constant 0 : i32
    return %0, %c0_i32, %c0_i32_0 : i32, i32, i32
  }
  func.func @transform_3(%arg0: i32, %arg1: i32) -> (i32, i32, i32) {
    %c3_i32 = arith.constant 3 : i32
    %0 = arith.minsi %arg1, %c3_i32 : i32
    %c0_i32 = arith.constant 0 : i32
    %c0_i32_0 = arith.constant 0 : i32
    %c0_i32_1 = arith.constant 0 : i32
    return %0, %c0_i32, %c0_i32_0 : i32, i32, i32
  }
  func.func @transform_4(%arg0: i32, %arg1: i32) -> (i32, i32, i32) {
    %c4_i32 = arith.constant 4 : i32
    %0 = arith.muli %arg0, %c4_i32 : i32
    %c3_i32 = arith.constant 3 : i32
    %1 = arith.subi %arg1, %c3_i32 : i32
    %c0_i32 = arith.constant 0 : i32
    %2 = arith.maxsi %1, %c0_i32 : i32
    %3 = arith.addi %0, %2 : i32
    %c0_i32_0 = arith.constant 0 : i32
    %c0_i32_1 = arith.constant 0 : i32
    %c0_i32_2 = arith.constant 0 : i32
    return %3, %c0_i32_0, %c0_i32_1 : i32, i32, i32
  }
  func.func @transform_5(%arg0: i32, %arg1: i32) -> (i32, i32) {
    %c4_i32 = arith.constant 4 : i32
    %0 = arith.muli %arg0, %c4_i32 : i32
    %c3_i32 = arith.constant 3 : i32
    %1 = arith.subi %arg1, %c3_i32 : i32
    %c0_i32 = arith.constant 0 : i32
    %2 = arith.maxsi %1, %c0_i32 : i32
    %3 = arith.addi %0, %2 : i32
    %c0_i32_0 = arith.constant 0 : i32
    %c0_i32_1 = arith.constant 0 : i32
    return %c0_i32_0, %3 : i32, i32
  }
}

module attributes {stable_mosaic.version = 11 : i64} {
  func.func @_fused_cross_attention_kernel(%arg0: i32, %arg1: i32, %arg2: memref<2x32xbf16, #tpu.memory_space<vmem>>, %arg3: memref<2x512xbf16, #tpu.memory_space<vmem>>, %arg4: memref<1x32x128xbf16, #tpu.memory_space<vmem>>, %arg5: memref<1x512x128xbf16, #tpu.memory_space<vmem>>, %arg6: memref<1x512x128xbf16, #tpu.memory_space<vmem>>, %arg7: memref<2x128xf32, #tpu.memory_space<vmem>>, %arg8: memref<2x2xf32, #tpu.memory_space<vmem>>) attributes {dimension_semantics = [#tpu.dimension_semantics<parallel>, #tpu.dimension_semantics<arbitrary>], iteration_bounds = array<i64: 1, 7>, scalar_prefetch = 0 : i64, scratch_operands = 1 : i64, tpu.core_type = #tpu.core_type<tc>, window_params = [{pipeline_mode = #tpu.pipeline_mode<synchronous>, transform_indices = @transform_0, window_bounds = array<i64: 2, 32>}, {pipeline_mode = #tpu.pipeline_mode<synchronous>, transform_indices = @transform_1, window_bounds = array<i64: 2, 512>}, {transform_indices = @transform_2, window_bounds = array<i64: 1, 32, 128>}, {transform_indices = @transform_3, window_bounds = array<i64: 1, 512, 128>}, {transform_indices = @transform_4, window_bounds = array<i64: 1, 512, 128>}, {transform_indices = @transform_5, window_bounds = array<i64: 2, 128>}]} {
    %c0_i32 = arith.constant 0 : i32
    %0 = arith.cmpi eq, %arg1, %c0_i32 : i32
    %1 = arith.extui %0 : i1 to i32
    %c0_i32_0 = arith.constant 0 : i32
    %2 = arith.cmpi ne, %1, %c0_i32_0 : i32
    scf.if %2 {
      %cst = arith.constant 0.000000e+00 : f32
      %12 = vector.broadcast %cst : f32 to vector<2x2xf32>
      %c0 = arith.constant 0 : index
      %c0_5 = arith.constant 0 : index
      %13 = vector.load %arg8[%c0, %c0_5] : memref<2x2xf32, #tpu.memory_space<vmem>>, vector<2x2xf32>
      tpu.vector_store %arg8[%c0, %c0_5], %12 {strides = array<i32>} : memref<2x2xf32, #tpu.memory_space<vmem>>, vector<2x2xf32>,
    } else {
    }
    %c4_i32 = arith.constant 4 : i32
    %3 = arith.cmpi slt, %arg1, %c4_i32 : i32
    %4 = arith.extui %3 : i1 to i32
    %c0_i32_1 = arith.constant 0 : i32
    %5 = arith.cmpi ne, %4, %c0_i32_1 : i32
    scf.if %5 {
      %c0 = arith.constant 0 : index
      %c0_5 = arith.constant 0 : index
      %12 = vector.load %arg2[%c0, %c0_5] : memref<2x32xbf16, #tpu.memory_space<vmem>>, vector<2x32xbf16>
      %c0_6 = arith.constant 0 : index
      %c0_7 = arith.constant 0 : index
      %c0_8 = arith.constant 0 : index
      %13 = vector.load %arg4[%c0_6, %c0_7, %c0_8] : memref<1x32x128xbf16, #tpu.memory_space<vmem>>, vector<1x32x128xbf16>
      %14 = vector.shape_cast %13 : vector<1x32x128xbf16> to vector<32x128xbf16>
      %cst = arith.constant dense<0.000000e+00> : vector<2x128xf32>
      %15 = tpu.matmul %12, %14, %cst {dimension_numbers = #tpu.dot_dimension_numbers<[1], [0], [0], [1], [0, 0, 1, 1], [], []>} : vector<2x32xbf16>, vector<32x128xbf16>, vector<2x128xf32> -> vector<2x128xf32>
      %c0_9 = arith.constant 0 : index
      %c0_10 = arith.constant 0 : index
      %16 = vector.load %arg3[%c0_9, %c0_10] : memref<2x512xbf16, #tpu.memory_space<vmem>>, vector<2x512xbf16>
      %c0_11 = arith.constant 0 : index
      %c0_12 = arith.constant 0 : index
      %c0_13 = arith.constant 0 : index
      %17 = vector.load %arg5[%c0_11, %c0_12, %c0_13] : memref<1x512x128xbf16, #tpu.memory_space<vmem>>, vector<1x512x128xbf16>
      %18 = vector.shape_cast %17 : vector<1x512x128xbf16> to vector<512x128xbf16>
      %cst_14 = arith.constant dense<0.000000e+00> : vector<2x128xf32>
      %19 = tpu.matmul %16, %18, %cst_14 {dimension_numbers = #tpu.dot_dimension_numbers<[1], [0], [0], [1], [0, 0, 1, 1], [], []>} : vector<2x512xbf16>, vector<512x128xbf16>, vector<2x128xf32> -> vector<2x128xf32>
      %c0_15 = arith.constant 0 : index
      %c0_16 = arith.constant 0 : index
      %20 = vector.load %arg8[%c0_15, %c0_16] : memref<2x2xf32, #tpu.memory_space<vmem>>, vector<2x2xf32>
      %cst_17 = arith.constant dense<0.000000e+00> : vector<2x2xf32>
      %21 = tpu.matmul %15, %19, %cst_17 {dimension_numbers = #tpu.dot_dimension_numbers<[1], [1], [0], [0], [0, 0, 1, 0], [], []>} : vector<2x128xf32>, vector<2x128xf32>, vector<2x2xf32> -> vector<2x2xf32>
      %22 = arith.addf %20, %21 : vector<2x2xf32>
      %c0_18 = arith.constant 0 : index
      %c0_19 = arith.constant 0 : index
      %23 = vector.load %arg8[%c0_18, %c0_19] : memref<2x2xf32, #tpu.memory_space<vmem>>, vector<2x2xf32>
      tpu.vector_store %arg8[%c0_18, %c0_19], %22 {strides = array<i32>} : memref<2x2xf32, #tpu.memory_space<vmem>>, vector<2x2xf32>,
    } else {
    }
    %c3_i32 = arith.constant 3 : i32
    %6 = arith.cmpi eq, %arg1, %c3_i32 : i32
    %7 = arith.extui %6 : i1 to i32
    %c0_i32_2 = arith.constant 0 : i32
    %8 = arith.cmpi ne, %7, %c0_i32_2 : i32
    scf.if %8 {
      %c0 = arith.constant 0 : index
      %c0_5 = arith.constant 0 : index
      %12 = vector.load %arg8[%c0, %c0_5] : memref<2x2xf32, #tpu.memory_space<vmem>>, vector<2x2xf32>
      %cst = arith.constant 0.0441941731 : f32
      %13 = vector.broadcast %cst : f32 to vector<2x2xf32>
      %14 = arith.mulf %12, %13 : vector<2x2xf32>
      %cst_6 = arith.constant dense<0xFF800000> : vector<2xf32>
      %15 = vector.multi_reduction <maximumf>, %14, %cst_6 [1] : vector<2x2xf32> to vector<2xf32>
      %16 = vector.shape_cast %15 : vector<2xf32> to vector<2x1xf32>
      %17 = vector.broadcast %16 : vector<2x1xf32> to vector<2x2xf32>
      %18 = arith.subf %14, %17 : vector<2x2xf32>
      %19 = math.exp %18 : vector<2x2xf32>
      %cst_7 = arith.constant dense<0.000000e+00> : vector<2xf32>
      %20 = vector.multi_reduction <add>, %19, %cst_7 [1] : vector<2x2xf32> to vector<2xf32>
      %21 = vector.shape_cast %20 : vector<2xf32> to vector<2x1xf32>
      %22 = tpu.reciprocal %21 {approx = true} : vector<2x1xf32> -> vector<2x1xf32>
      %23 = vector.broadcast %22 : vector<2x1xf32> to vector<2x2xf32>
      %24 = arith.mulf %19, %23 : vector<2x2xf32>
      %c0_8 = arith.constant 0 : index
      %c0_9 = arith.constant 0 : index
      %25 = vector.load %arg8[%c0_8, %c0_9] : memref<2x2xf32, #tpu.memory_space<vmem>>, vector<2x2xf32>
      tpu.vector_store %arg8[%c0_8, %c0_9], %24 {strides = array<i32>} : memref<2x2xf32, #tpu.memory_space<vmem>>, vector<2x2xf32>,
    } else {
    }
    %c3_i32_3 = arith.constant 3 : i32
    %9 = arith.cmpi sge, %arg1, %c3_i32_3 : i32
    %10 = arith.extui %9 : i1 to i32
    %c0_i32_4 = arith.constant 0 : i32
    %11 = arith.cmpi ne, %10, %c0_i32_4 : i32
    scf.if %11 {
      %c0 = arith.constant 0 : index
      %c0_5 = arith.constant 0 : index
      %12 = vector.load %arg3[%c0, %c0_5] : memref<2x512xbf16, #tpu.memory_space<vmem>>, vector<2x512xbf16>
      %c0_6 = arith.constant 0 : index
      %c0_7 = arith.constant 0 : index
      %c0_8 = arith.constant 0 : index
      %13 = vector.load %arg6[%c0_6, %c0_7, %c0_8] : memref<1x512x128xbf16, #tpu.memory_space<vmem>>, vector<1x512x128xbf16>
      %14 = vector.shape_cast %13 : vector<1x512x128xbf16> to vector<512x128xbf16>
      %cst = arith.constant dense<0.000000e+00> : vector<2x128xf32>
      %15 = tpu.matmul %12, %14, %cst {dimension_numbers = #tpu.dot_dimension_numbers<[1], [0], [0], [1], [0, 0, 1, 1], [], []>} : vector<2x512xbf16>, vector<512x128xbf16>, vector<2x128xf32> -> vector<2x128xf32>
      %c0_9 = arith.constant 0 : index
      %c0_10 = arith.constant 0 : index
      %16 = vector.load %arg8[%c0_9, %c0_10] : memref<2x2xf32, #tpu.memory_space<vmem>>, vector<2x2xf32>
      %cst_11 = arith.constant dense<0.000000e+00> : vector<2x128xf32>
      %17 = tpu.matmul %16, %15, %cst_11 {dimension_numbers = #tpu.dot_dimension_numbers<[1], [0], [0], [1], [0, 0, 1, 1], [], []>} : vector<2x2xf32>, vector<2x128xf32>, vector<2x128xf32> -> vector<2x128xf32>
      %c0_12 = arith.constant 0 : index
      %c0_13 = arith.constant 0 : index
      %18 = vector.load %arg7[%c0_12, %c0_13] : memref<2x128xf32, #tpu.memory_space<vmem>>, vector<2x128xf32>
      tpu.vector_store %arg7[%c0_12, %c0_13], %17 {strides = array<i32>} : memref<2x128xf32, #tpu.memory_space<vmem>>, vector<2x128xf32>,
    } else {
    }
    return
  }
  func.func @transform_0(%arg0: i32, %arg1: i32) -> (i32, i32) {
    %c0_i32 = arith.constant 0 : i32
    %c0_i32_0 = arith.constant 0 : i32
    %c0_i32_1 = arith.constant 0 : i32
    return %c0_i32, %c0_i32_0 : i32, i32
  }
  func.func @transform_1(%arg0: i32, %arg1: i32) -> (i32, i32) {
    %c0_i32 = arith.constant 0 : i32
    %c0_i32_0 = arith.constant 0 : i32
    %c0_i32_1 = arith.constant 0 : i32
    return %c0_i32, %c0_i32_0 : i32, i32
  }
  func.func @transform_2(%arg0: i32, %arg1: i32) -> (i32, i32, i32) {
    %c3_i32 = arith.constant 3 : i32
    %0 = arith.minsi %arg1, %c3_i32 : i32
    %c0_i32 = arith.constant 0 : i32
    %c0_i32_0 = arith.constant 0 : i32
    %c0_i32_1 = arith.constant 0 : i32
    return %0, %c0_i32, %c0_i32_0 : i32, i32, i32
  }
  func.func @transform_3(%arg0: i32, %arg1: i32) -> (i32, i32, i32) {
    %c3_i32 = arith.constant 3 : i32
    %0 = arith.minsi %arg1, %c3_i32 : i32
    %c0_i32 = arith.constant 0 : i32
    %c0_i32_0 = arith.constant 0 : i32
    %c0_i32_1 = arith.constant 0 : i32
    return %0, %c0_i32, %c0_i32_0 : i32, i32, i32
  }
  func.func @transform_4(%arg0: i32, %arg1: i32) -> (i32, i32, i32) {
    %c4_i32 = arith.constant 4 : i32
    %0 = arith.muli %arg0, %c4_i32 : i32
    %c3_i32 = arith.constant 3 : i32
    %1 = arith.subi %arg1, %c3_i32 : i32
    %c0_i32 = arith.constant 0 : i32
    %2 = arith.maxsi %1, %c0_i32 : i32
    %3 = arith.addi %0, %2 : i32
    %c0_i32_0 = arith.constant 0 : i32
    %c0_i32_1 = arith.constant 0 : i32
    %c0_i32_2 = arith.constant 0 : i32
    return %3, %c0_i32_0, %c0_i32_1 : i32, i32, i32
  }
  func.func @transform_5(%arg0: i32, %arg1: i32) -> (i32, i32) {
    %c4_i32 = arith.constant 4 : i32
    %0 = arith.muli %arg0, %c4_i32 : i32
    %c3_i32 = arith.constant 3 : i32
    %1 = arith.subi %arg1, %c3_i32 : i32
    %c0_i32 = arith.constant 0 : i32
    %2 = arith.maxsi %1, %c0_i32 : i32
    %3 = arith.addi %0, %2 : i32
    %c0_i32_0 = arith.constant 0 : i32
    %c0_i32_1 = arith.constant 0 : i32
    return %c0_i32_0, %3 : i32, i32
  }
}

</mosaic_0001>

<llo_original>
// kernel: tpu_custom_call.1
$region0: #{tpu_custom_call.1}
  #allocation0 [shape = 'u32[]', space=smem, size = 0x4, offset = 0x4, fixed_abs, tag = 'smem constant byte address 0x4 - core index']
  #allocation1 [shape = 'u32[144,128]{1,0:T(1,128)}', space=vmem, size = 0x12000, scoped, tag = 'internal scratch']
  #allocation2 [shape = 'f32[2,2]{1,0:T(2,128)}', space=vmem, size = 0x400, scoped, tag = 'scratch operand']
  %s0 = inlined_call_operand.hbm [shape: bf16[2,32], index: 0, kind: input, shape index: {}]
  %s1 = inlined_call_operand.hbm [shape: bf16[2,512], index: 1, kind: input, shape index: {}]
  %s2 = inlined_call_operand.hbm [shape: bf16[4,32,128], index: 2, kind: input, shape index: {}]
  %s3 = inlined_call_operand.hbm [shape: bf16[4,512,128], index: 3, kind: input, shape index: {}]
  %s4 = inlined_call_operand.hbm [shape: bf16[4,512,128], index: 4, kind: input, shape index: {}]
  %s5 = inlined_call_operand.hbm [shape: f32[2,512], index: 5, kind: output, shape index: {}]
  %s6 = sld [smem:[#allocation0]]
  $region89: #{tpu_custom_call.1} parent=0
    _
  %s8 = ssub.s32 1, %s6
  %s9 = scalar_select 0, %s8, %s6
  $region1: #{tpu_custom_call.1} parent=0
    #allocation3 [shape = 'u8[512]{0}', space=vmem, size = 0x400, scoped, tag = 'input window, operand 0, single buffered']
    #allocation4 [shape = 's32[2]{0}', space=sflag, size = 0x8, scoped, tag = 'scoped memory for tpu_custom_call.1']
    #allocation5 [shape = 's32[2]{0}', space=sflag, size = 0x8, scoped, tag = 'scoped memory for tpu_custom_call.1']
    #allocation6 [shape = 'u8[2048]{0}', space=vmem, size = 0x800, scoped, tag = 'input window, operand 1, single buffered']
    #allocation7 [shape = 's32[1]{0}', space=sflag, size = 0x4, scoped, tag = 'scoped memory for tpu_custom_call.1']
    #allocation8 [shape = 'u8[16384]{0}', space=vmem, size = 0x4000, scoped, tag = 'input window, operand 2']
    #allocation9 [shape = 'u8[262144]{0}', space=vmem, size = 0x40000, scoped, tag = 'input window, operand 3']
    #allocation10 [shape = 'u8[262144]{0}', space=vmem, size = 0x40000, scoped, tag = 'input window, operand 4']
    #allocation11 [shape = 'u8[2048]{0}', space=vmem, size = 0x800, scoped, tag = 'output window, operand 0']
    %10 = vsyncpa [#allocation4], 0
    %11 = vsyncpa [#allocation7], 0
    %12 = vsyncpa [#allocation5], 0
    %s13 = scalar_lea.sflag [#allocation5], 1
    %14 = vsyncpa %s13, 0
    loop: start=0, step=1, limit=9
    $region2: #{tpu_custom_call.1} parent=1 // loop_pre_header
      _
    $region3: #{tpu_custom_call.1} parent=1 // loop_header
      %s16 = sphi 0, %s20
      %p17 = scmp.ge.s32.totalorder %s16, 9
      %s23 = sphi 0, %s35
      %s24 = sphi 0, %s31
      %s25 = sphi 0, %s23
      %s26 = sphi 0, %s24
      %s27 = sphi 0, %s25
      %s28 = sphi 0, %s26
      %s36 = sphi 0, %s36
      %s38 = sphi 0, %s36
      %s39 = sphi 0, %s38
      %s53 = sphi 0, %s39
      %s57 = sphi 0, %s57
      %s59 = sphi 0, %s57
      %s60 = sphi 0, %s59
      %s74 = sphi 0, %s60
      %s84 = sphi 0, %s86
      %s87 = sphi 0, %s84
      %s88 = sphi 0, %s87
      %s104 = sphi 0, %s88
      %s114 = sphi 0, %s116
      %s117 = sphi 0, %s114
      %s118 = sphi 0, %s117
      %s134 = sphi 0, %s118
      %s150 = sphi 0, %s152
      %s153 = sphi 0, %s150
      %s154 = sphi 0, %s153
      %s170 = sphi 0, %s154
      %s186 = sphi 0, %s188
      %s189 = sphi 0, %s186
      %s190 = sphi 0, %s189
      %s206 = sphi 0, %s190
    $region4: #{tpu_custom_call.1} parent=1 // loop_header_branch
      %19 = sbr.rel (%p17) target = $region8
    $region5: #{tpu_custom_call.1} parent=1 // loop_body
      %s21 = ssub.s32 %s16, 1
      %s22 = ssub.s32 %s16, 2
      %s29 = sadd.s32 1, %s24
      %p30 = scmp.ge.s32.totalorder %s29, 7
      %s31 = scalar_select %p30, 0, %s29
      %s32 = sadd.s32 1, %s23
      %s33 = scalar_select %p30, %s32, %s23
      %p34 = scmp.ge.s32.totalorder %s33, 1
      %s35 = scalar_select %p34, 0, %s33
      %s37 = sadd.s32 %s36, 1
      %p40 = scmp.eq.s32.totalorder %s16, 6
      %p41 = scmp.ne.s32.totalorder %s36, %s38
      %p42 = scmp.eq.s32.totalorder %s16, 0
      %p43 = por %p41, %p42
      %p44 = scmp.ne.s32.totalorder %s36, %s38
      %p45 = scmp.eq.s32.totalorder %s21, 6
      %p46 = por %p44, %p45
      %p47 = scmp.ne.s32.totalorder %s38, %s39
      %p48 = scmp.eq.s32.totalorder %s21, 0
      %p49 = por %p47, %p48
      %p50 = scmp.ne.s32.totalorder %s38, %s39
      %p51 = scmp.eq.s32.totalorder %s22, 6
      %p52 = por %p50, %p51
      %p54 = scmp.ne.s32.totalorder %s39, %s53
      %p55 = scmp.eq.s32.totalorder %s22, 0
      %p56 = por %p54, %p55
      %s58 = sadd.s32 %s57, 1
      %p61 = scmp.eq.s32.totalorder %s16, 6
      %p62 = scmp.ne.s32.totalorder %s57, %s59
      %p63 = scmp.eq.s32.totalorder %s16, 0
      %p64 = por %p62, %p63
      %p65 = scmp.ne.s32.totalorder %s57, %s59
      %p66 = scmp.eq.s32.totalorder %s21, 6
      %p67 = por %p65, %p66
      %p68 = scmp.ne.s32.totalorder %s59, %s60
      %p69 = scmp.eq.s32.totalorder %s21, 0
      %p70 = por %p68, %p69
      %p71 = scmp.ne.s32.totalorder %s59, %s60
      %p72 = scmp.eq.s32.totalorder %s22, 6
      %p73 = por %p71, %p72
      %p75 = scmp.ne.s32.totalorder %s60, %s74
      %p76 = scmp.eq.s32.totalorder %s22, 0
      %p77 = por %p75, %p76
      %p78 = scmp.lt.s32.totalorder %s24, 3
      %s79 = scalar_select %p78, %s24, 3
      %p80 = scmp.lt.s32.totalorder %s31, 3
      %s81 = scalar_select %p80, %s31, 3
      %s82 = ssub.s32 %s79, %s81
      %p83 = scmp.eq.s32.totalorder %s82, 0
      %s85 = sadd.s32 %s84, 1
      %s86 = scalar_select %p83, %s84, %s85
      %p89 = pneg %p83
      %p90 = scmp.eq.s32.totalorder %s16, 6
      %p91 = por %p89, %p90
      %p92 = scmp.ne.s32.totalorder %s84, %s87
      %p93 = scmp.eq.s32.totalorder %s16, 0
      %p94 = por %p92, %p93
      %p95 = scmp.ne.s32.totalorder %s84, %s87
      %p96 = scmp.eq.s32.totalorder %s21, 6
      %p97 = por %p95, %p96
      %p98 = scmp.ne.s32.totalorder %s87, %s88
      %p99 = scmp.eq.s32.totalorder %s21, 0
      %p100 = por %p98, %p99
      %p101 = scmp.ne.s32.totalorder %s87, %s88
      %p102 = scmp.eq.s32.totalorder %s22, 6
      %p103 = por %p101, %p102
      %p105 = scmp.ne.s32.totalorder %s88, %s104
      %p106 = scmp.eq.s32.totalorder %s22, 0
      %p107 = por %p105, %p106
      %p108 = scmp.lt.s32.totalorder %s24, 3
      %s109 = scalar_select %p108, %s24, 3
      %p110 = scmp.lt.s32.totalorder %s31, 3
      %s111 = scalar_select %p110, %s31, 3
      %s112 = ssub.s32 %s109, %s111
      %p113 = scmp.eq.s32.totalorder %s112, 0
      %s115 = sadd.s32 %s114, 1
      %s116 = scalar_select %p113, %s114, %s115
      %p119 = pneg %p113
      %p120 = scmp.eq.s32.totalorder %s16, 6
      %p121 = por %p119, %p120
      %p122 = scmp.ne.s32.totalorder %s114, %s117
      %p123 = scmp.eq.s32.totalorder %s16, 0
      %p124 = por %p122, %p123
      %p125 = scmp.ne.s32.totalorder %s114, %s117
      %p126 = scmp.eq.s32.totalorder %s21, 6
      %p127 = por %p125, %p126
      %p128 = scmp.ne.s32.totalorder %s117, %s118
      %p129 = scmp.eq.s32.totalorder %s21, 0
      %p130 = por %p128, %p129
      %p131 = scmp.ne.s32.totalorder %s117, %s118
      %p132 = scmp.eq.s32.totalorder %s22, 6
      %p133 = por %p131, %p132
      %p135 = scmp.ne.s32.totalorder %s118, %s134
      %p136 = scmp.eq.s32.totalorder %s22, 0
      %p137 = por %p135, %p136
      %s138 = smul.u32 %s23, 4
      %s139 = ssub.s32 %s24, 3
      %p140 = scmp.gt.s32.totalorder %s139, 0
      %s141 = scalar_select %p140, %s139, 0
      %s142 = sadd.s32 %s138, %s141
      %s143 = smul.u32 %s35, 4
      %s144 = ssub.s32 %s31, 3
      %p145 = scmp.gt.s32.totalorder %s144, 0
      %s146 = scalar_select %p145, %s144, 0
      %s147 = sadd.s32 %s143, %s146
      %s148 = ssub.s32 %s142, %s147
      %p149 = scmp.eq.s32.totalorder %s148, 0
      %s151 = sadd.s32 %s150, 1
      %s152 = scalar_select %p149, %s150, %s151
      %p155 = pneg %p149
      %p156 = scmp.eq.s32.totalorder %s16, 6
      %p157 = por %p155, %p156
      %p158 = scmp.ne.s32.totalorder %s150, %s153
      %p159 = scmp.eq.s32.totalorder %s16, 0
      %p160 = por %p158, %p159
      %p161 = scmp.ne.s32.totalorder %s150, %s153
      %p162 = scmp.eq.s32.totalorder %s21, 6
      %p163 = por %p161, %p162
      %p164 = scmp.ne.s32.totalorder %s153, %s154
      %p165 = scmp.eq.s32.totalorder %s21, 0
      %p166 = por %p164, %p165
      %p167 = scmp.ne.s32.totalorder %s153, %s154
      %p168 = scmp.eq.s32.totalorder %s22, 6
      %p169 = por %p167, %p168
      %p171 = scmp.ne.s32.totalorder %s154, %s170
      %p172 = scmp.eq.s32.totalorder %s22, 0
      %p173 = por %p171, %p172
      %s174 = smul.u32 %s23, 4
      %s175 = ssub.s32 %s24, 3
      %p176 = scmp.gt.s32.totalorder %s175, 0
      %s177 = scalar_select %p176, %s175, 0
      %s178 = sadd.s32 %s174, %s177
      %s179 = smul.u32 %s35, 4
      %s180 = ssub.s32 %s31, 3
      %p181 = scmp.gt.s32.totalorder %s180, 0
      %s182 = scalar_select %p181, %s180, 0
      %s183 = sadd.s32 %s179, %s182
      %s184 = ssub.s32 %s178, %s183
      %p185 = scmp.eq.s32.totalorder %s184, 0
      %s187 = sadd.s32 %s186, 1
      %s188 = scalar_select %p185, %s186, %s187
      %p191 = pneg %p185
      %p192 = scmp.eq.s32.totalorder %s16, 6
      %p193 = por %p191, %p192
      %p194 = scmp.ne.s32.totalorder %s186, %s189
      %p195 = scmp.eq.s32.totalorder %s16, 0
      %p196 = por %p194, %p195
      %p197 = scmp.ne.s32.totalorder %s186, %s189
      %p198 = scmp.eq.s32.totalorder %s21, 6
      %p199 = por %p197, %p198
      %p200 = scmp.ne.s32.totalorder %s189, %s190
      %p201 = scmp.eq.s32.totalorder %s21, 0
      %p202 = por %p200, %p201
      %p203 = scmp.ne.s32.totalorder %s189, %s190
      %p204 = scmp.eq.s32.totalorder %s22, 6
      %p205 = por %p203, %p204
      %p207 = scmp.ne.s32.totalorder %s190, %s206
      %p208 = scmp.eq.s32.totalorder %s22, 0
      %p209 = por %p207, %p208
      %p210 = scmp.le.s32.totalorder 1, %s16
      %p211 = scmp.lt.s32.totalorder %s16, 8
      %p212 = pnand %p210, %p211
      %p213 = pneg %p212
      // Predicated region
      $region9: #{tpu_custom_call.1} parent=5 // pred_check
        _
      $region10: #{tpu_custom_call.1} parent=5 // pred_check_branch
        %215 = sbr.rel (%p212) target = $region12
      $region11: #{tpu_custom_call.1} parent=5 // pred_region
        %s216 = ssub.s32 %s16, 1
        // Predicated region
        $region13: #{tpu_custom_call.1} parent=11 // pred_check
          %p217 = pneg %p49
        $region14: #{tpu_custom_call.1} parent=11 // pred_check_branch
          %219 = sbr.rel (%p217) target = $region16
        $region15: #{tpu_custom_call.1} parent=11 // pred_region
          %s221 = ssub.s32 16, 16
          %222 = vsyncadd [#allocation4], %s221
          %s224 = sshll.u32 [#allocation3], 4
          %s225 = int_to_ptr.vmem [resolvable:$true] %s224
          %227 = dma.hbm_to_vmem [thread:$0]  %s0, 16, %s225, [#allocation4]
        $region16: #{tpu_custom_call.1} parent=11 // pred_fallthru
          _
        // Predicated region
        $region17: #{tpu_custom_call.1} parent=11 // pred_check
          %p228 = pneg %p70
        $region18: #{tpu_custom_call.1} parent=11 // pred_check_branch
          %230 = sbr.rel (%p228) target = $region20
        $region19: #{tpu_custom_call.1} parent=11 // pred_region
          %s232 = ssub.s32 64, 64
          %233 = vsyncadd [#allocation7], %s232
          %s235 = sshll.u32 [#allocation6], 4
          %s236 = int_to_ptr.vmem [resolvable:$true] %s235
          %238 = dma.hbm_to_vmem [thread:$0]  %s1, 64, %s236, [#allocation7]
        $region20: #{tpu_custom_call.1} parent=11 // pred_fallthru
          _
      $region12: #{tpu_custom_call.1} parent=5 // pred_fallthru
        _
      %p239 = scmp.lt.s32.totalorder %s16, 7
      // Predicated region
      $region21: #{tpu_custom_call.1} parent=5 // pred_check
        %p240 = pneg %p239
      $region22: #{tpu_custom_call.1} parent=5 // pred_check_branch
        %242 = sbr.rel (%p240) target = $region24
      $region23: #{tpu_custom_call.1} parent=5 // pred_region
        // Predicated region
        $region25: #{tpu_custom_call.1} parent=23 // pred_check
          %p243 = pneg %p94
        $region26: #{tpu_custom_call.1} parent=23 // pred_check_branch
          %245 = sbr.rel (%p243) target = $region28
        $region27: #{tpu_custom_call.1} parent=23 // pred_region
          %s246 = sand.u32 %s16, 1
          %s247 = scalar_lea.sflag [#allocation4], %s246
          %s248 = sand.u32 %s84, 1
          %s249 = smul.addr %s248, 16
          %s250 = scalar_lea.vmem [#allocation8], %s249
          %p251 = scmp.lt.s32.totalorder %s24, 3
          %s252 = scalar_select %p251, %s24, 3
          %s254 = ssub.s32 256, 256
          %255 = vsyncadd %s247, %s254
          %s256 = smul.addr %s252, 4
          %s257 = smul.addr %s256, 64
          %s258 = scalar_lea.hbm %s2, %s257
          %s259 = sshll.u32 %s250, 4
          %s260 = int_to_ptr.vmem [resolvable:$true] %s259
          %265 = dma.hbm_to_vmem [thread:$0]  %s258, 256, %s260, %s247, 64, 64, 4
        $region28: #{tpu_custom_call.1} parent=23 // pred_fallthru
          _
        // Predicated region
        $region29: #{tpu_custom_call.1} parent=23 // pred_check
          %p266 = pneg %p124
        $region30: #{tpu_custom_call.1} parent=23 // pred_check_branch
          %268 = sbr.rel (%p266) target = $region32
        $region31: #{tpu_custom_call.1} parent=23 // pred_region
          %s269 = sand.u32 %s16, 1
          %s270 = scalar_lea.sflag [#allocation4], %s269
          %s271 = sand.u32 %s114, 1
          %s272 = smul.addr %s271, 256
          %s273 = scalar_lea.vmem [#allocation9], %s272
          %p274 = scmp.lt.s32.totalorder %s24, 3
          %s275 = scalar_select %p274, %s24, 3
          %s277 = ssub.s32 4096, 4096
          %278 = vsyncadd %s270, %s277
          %s279 = smul.addr %s275, 64
          %s280 = smul.addr %s279, 64
          %s281 = scalar_lea.hbm %s3, %s280
          %s282 = sshll.u32 %s273, 4
          %s283 = int_to_ptr.vmem [resolvable:$true] %s282
          %288 = dma.hbm_to_vmem [thread:$0]  %s281, 4096, %s283, %s270, 64, 64, 4
        $region32: #{tpu_custom_call.1} parent=23 // pred_fallthru
          _
        // Predicated region
        $region33: #{tpu_custom_call.1} parent=23 // pred_check
          %p289 = pneg %p160
        $region34: #{tpu_custom_call.1} parent=23 // pred_check_branch
          %291 = sbr.rel (%p289) target = $region36
        $region35: #{tpu_custom_call.1} parent=23 // pred_region
          %s292 = sand.u32 %s16, 1
          %s293 = scalar_lea.sflag [#allocation4], %s292
          %s294 = sand.u32 %s150, 1
          %s295 = smul.addr %s294, 256
          %s296 = scalar_lea.vmem [#allocation10], %s295
          %s297 = smul.u32 %s23, 4
          %s298 = ssub.s32 %s24, 3
          %p299 = scmp.gt.s32.totalorder %s298, 0
          %s300 = scalar_select %p299, %s298, 0
          %s301 = sadd.s32 %s297, %s300
          %s303 = ssub.s32 4096, 4096
          %304 = vsyncadd %s293, %s303
          %s305 = smul.addr %s301, 64
          %s306 = smul.addr %s305, 64
          %s307 = scalar_lea.hbm %s4, %s306
          %s308 = sshll.u32 %s296, 4
          %s309 = int_to_ptr.vmem [resolvable:$true] %s308
          %314 = dma.hbm_to_vmem [thread:$0]  %s307, 4096, %s309, %s293, 64, 64, 4
        $region36: #{tpu_custom_call.1} parent=23 // pred_fallthru
          _
      $region24: #{tpu_custom_call.1} parent=5 // pred_fallthru
        _
      %p315 = scmp.le.s32.totalorder 1, %s16
      %p316 = scmp.lt.s32.totalorder %s16, 8
      %p317 = pnand %p315, %p316
      %p318 = pneg %p317
      // Predicated region
      $region37: #{tpu_custom_call.1} parent=5 // pred_check
        _
      $region38: #{tpu_custom_call.1} parent=5 // pred_check_branch
        %320 = sbr.rel (%p317) target = $region40
      $region39: #{tpu_custom_call.1} parent=5 // pred_region
        %s321 = ssub.s32 %s16, 1
        // Predicated region
        $region41: #{tpu_custom_call.1} parent=39 // pred_check
          %p322 = pneg %p49
        $region42: #{tpu_custom_call.1} parent=39 // pred_check_branch
          %324 = sbr.rel (%p322) target = $region44
        $region43: #{tpu_custom_call.1} parent=39 // pred_region
          %325 = dma.done [#allocation4], 16
        $region44: #{tpu_custom_call.1} parent=39 // pred_fallthru
          _
        // Predicated region
        $region45: #{tpu_custom_call.1} parent=39 // pred_check
          %p326 = pneg %p70
        $region46: #{tpu_custom_call.1} parent=39 // pred_check_branch
          %328 = sbr.rel (%p326) target = $region48
        $region47: #{tpu_custom_call.1} parent=39 // pred_region
          %329 = dma.done [#allocation7], 64
        $region48: #{tpu_custom_call.1} parent=39 // pred_fallthru
          _
        %s330 = sand.u32 %s21, 1
        %s331 = scalar_lea.sflag [#allocation4], %s330
        %s332 = sand.u32 %s87, 1
        %s333 = smul.addr %s332, 16
        %s334 = scalar_lea.vmem [#allocation8], %s333
        // Predicated region
        $region49: #{tpu_custom_call.1} parent=39 // pred_check
          %p335 = pneg %p100
        $region50: #{tpu_custom_call.1} parent=39 // pred_check_branch
          %337 = sbr.rel (%p335) target = $region52
        $region51: #{tpu_custom_call.1} parent=39 // pred_region
          %338 = dma.done %s331, 256
        $region52: #{tpu_custom_call.1} parent=39 // pred_fallthru
          _
        %s339 = sand.u32 %s21, 1
        %s340 = scalar_lea.sflag [#allocation4], %s339
        %s341 = sand.u32 %s117, 1
        %s342 = smul.addr %s341, 256
        %s343 = scalar_lea.vmem [#allocation9], %s342
        // Predicated region
        $region53: #{tpu_custom_call.1} parent=39 // pred_check
          %p344 = pneg %p130
        $region54: #{tpu_custom_call.1} parent=39 // pred_check_branch
          %346 = sbr.rel (%p344) target = $region56
        $region55: #{tpu_custom_call.1} parent=39 // pred_region
          %347 = dma.done %s340, 4096
        $region56: #{tpu_custom_call.1} parent=39 // pred_fallthru
          _
        %s348 = sand.u32 %s21, 1
        %s349 = scalar_lea.sflag [#allocation4], %s348
        %s350 = sand.u32 %s153, 1
        %s351 = smul.addr %s350, 256
        %s352 = scalar_lea.vmem [#allocation10], %s351
        // Predicated region
        $region57: #{tpu_custom_call.1} parent=39 // pred_check
          %p353 = pneg %p166
        $region58: #{tpu_custom_call.1} parent=39 // pred_check_branch
          %355 = sbr.rel (%p353) target = $region60
        $region59: #{tpu_custom_call.1} parent=39 // pred_region
          %356 = dma.done %s349, 4096
        $region60: #{tpu_custom_call.1} parent=39 // pred_fallthru
          _
        %p357 = pneg %p49
        %p358 = pneg %p46
        %p359 = pneg %p70
        %p360 = pneg %p67
        %s361 = sand.u32 %s21, 1
        %s362 = scalar_lea.sflag [#allocation4], %s361
        %s363 = sand.u32 %s87, 1
        %s364 = smul.addr %s363, 16
        %s365 = scalar_lea.vmem [#allocation8], %s364
        %p366 = pneg %p100
        %p367 = pneg %p97
        %s368 = sand.u32 %s21, 1
        %s369 = scalar_lea.sflag [#allocation4], %s368
        %s370 = sand.u32 %s117, 1
        %s371 = smul.addr %s370, 256
        %s372 = scalar_lea.vmem [#allocation9], %s371
        %p373 = pneg %p130
        %p374 = pneg %p127
        %s375 = sand.u32 %s21, 1
        %s376 = scalar_lea.sflag [#allocation4], %s375
        %s377 = sand.u32 %s153, 1
        %s378 = smul.addr %s377, 256
        %s379 = scalar_lea.vmem [#allocation10], %s378
        %p380 = pneg %p166
        %p381 = pneg %p163
        %p382 = pneg %p202
        %p383 = pneg %p199
        %s384 = sand.u32 %s189, 1
        %s385 = scalar_lea.sflag [#allocation5], %s384
        %s386 = sand.u32 %s189, 1
        %s387 = smul.addr %s386, 2
        %s388 = scalar_lea.vmem [#allocation11], %s387
        %p389 = scmp.lt.s32.totalorder %s26, 3
        %s390 = scalar_select %p389, %s26, 3
        %p391 = scmp.lt.s32.totalorder %s26, 3
        %s392 = scalar_select %p391, %s26, 3
        %s393 = smul.u32 %s25, 4
        %s394 = ssub.s32 %s26, 3
        %p395 = scmp.gt.s32.totalorder %s394, 0
        %s396 = scalar_select %p395, %s394, 0
        %s397 = sadd.s32 %s393, %s396
        %s398 = smul.u32 %s25, 4
        %s399 = ssub.s32 %s26, 3
        %p400 = scmp.gt.s32.totalorder %s399, 0
        %s401 = scalar_select %p400, %s399, 0
        %s402 = sadd.s32 %s398, %s401
        %p404 = scmp.eq.s32.totalorder %s26, 0
        // Predicated region
        $region61: #{tpu_custom_call.1} parent=39 // pred_check
          %p405 = pneg %p404
        $region62: #{tpu_custom_call.1} parent=39 // pred_check_branch
          %407 = sbr.rel (%p405) target = $region64
        $region63: #{tpu_custom_call.1} parent=39 // pred_region
          %vm408 = vcmask 9216
          %409 = vst.msk [vmem:[#allocation2] sm:$0x3] %vm408, 0.0
        $region64: #{tpu_custom_call.1} parent=39 // pred_fallthru
          _
        %p410 = scmp.lt.s32.totalorder %s26, 4
        // Predicated region
        $region65: #{tpu_custom_call.1} parent=39 // pred_check
          %p411 = pneg %p410
        $region66: #{tpu_custom_call.1} parent=39 // pred_check_branch
          %413 = sbr.rel (%p411) target = $region68
        $region67: #{tpu_custom_call.1} parent=39 // pred_region
          %v414 = vld [vmem:[#allocation3] sm:$0x1]
          %v415 = vld [vmem:[%s334] sm:$0xf]
          %v416 = vld [vmem:[%s334 + $0x4] sm:$0xf]
          %v417 = vld [vmem:[%s334 + $0x8] sm:$0xf]
          %v418 = vld [vmem:[%s334 + $0xc] sm:$0xf]
          %v423 = vunpack.c.l.b16 %v415
          %v424 = vunpack.c.l.b16 %v416
          %v425 = vunpack.c.l.b16 %v417
          %v426 = vunpack.c.l.b16 %v418
          %v427 = vpack.c.b16 %v424, %v423
          %v428 = vpack.c.b16 %v426, %v425
          %vm431 = vcmask 261120
          %v433 = vsel %vm431, %v414, 0
          %435 = vmatprep.subr.bf16.mxu0 0
          %436 = vmatpush1.bf16.msra.mxu0 0
          %437 = vmatprep.subr.bf16.mxu0 0
          %438 = vmatpush1.bf16.msra.mxu0 0
          %439 = vmatprep.subr.bf16.mxu0 0
          %440 = vmatpush1.bf16.msra.mxu0 0
          %441 = vmatprep.subr.bf16.mxu0 0
          %442 = vmatpush1.bf16.msra.mxu0 0
          %443 = vmatprep.subr.bf16.mxu0 0
          %444 = vmatpush1.bf16.msra.mxu0 0
          %445 = vmatprep.subr.bf16.mxu0 0
          %446 = vmatpush1.bf16.msra.mxu0 0
          %447 = vmatprep.subr.bf16.mxu0 0
          %448 = vmatpush1.bf16.msra.mxu0 %v428
          %449 = vmatprep.subr.bf16.mxu0 0
          %450 = vmatpush1.bf16.msra.mxu0 %v427
          %451 = vmatprep.subr.bf16.mxu0 0
          %452 = vmatpush2.bf16.msra.mxu0 0
          %453 = vmatprep.subr.bf16.mxu0 0
          %454 = vmatpush2.bf16.msra.mxu0 0
          %455 = vmatprep.subr.bf16.mxu0 0
          %456 = vmatpush2.bf16.msra.mxu0 0
          %457 = vmatprep.subr.bf16.mxu0 0
          %458 = vmatpush2.bf16.msra.mxu0 0
          %459 = vmatprep.subr.bf16.mxu0 0
          %460 = vmatpush2.bf16.msra.mxu0 0
          %461 = vmatprep.subr.bf16.mxu0 0
          %462 = vmatpush2.bf16.msra.mxu0 0
          %463 = vmatprep.subr.bf16.mxu0 0
          %464 = vmatpush2.bf16.msra.mxu0 0
          %465 = vmatprep.subr.bf16.mxu0 0
          %466 = vmatpush2.bf16.msra.mxu0 0
          %467 = vmatprep.mubr.bf16.mxu0 0
          %468 = vmatmul.mubr.bf16.gmra.mxu0 %v433
          %v469 = vpop.f32.mrf.mxu0
          %v470 = vadd.f32 0.0, %v469
          %v471 = vpop.f32.mrf.mxu0
          %v472 = vpop.f32.mrf.mxu0
          %v473 = vpop.f32.mrf.mxu0
          %474 = vdwg.mxu0
          %v475 = vld [vmem:[#allocation6] sm:$0xf]
          %v476 = vld [vmem:[%s343] sm:$0xf]
          %v477 = vld [vmem:[%s343 + $0x4] sm:$0xf]
          %v478 = vld [vmem:[%s343 + $0x8] sm:$0xf]
          %v479 = vld [vmem:[%s343 + $0xc] sm:$0xf]
          %v480 = vld [vmem:[%s343 + $0x10] sm:$0xf]
          %v481 = vld [vmem:[%s343 + $0x14] sm:$0xf]
          %v482 = vld [vmem:[%s343 + $0x18] sm:$0xf]
          %v483 = vld [vmem:[%s343 + $0x1c] sm:$0xf]
          %v484 = vld [vmem:[%s343 + $0x20] sm:$0xf]
          %v485 = vld [vmem:[%s343 + $0x24] sm:$0xf]
          %v486 = vld [vmem:[%s343 + $0x28] sm:$0xf]
          %v487 = vld [vmem:[%s343 + $0x2c] sm:$0xf]
          %v488 = vld [vmem:[%s343 + $0x30] sm:$0xf]
          %v489 = vld [vmem:[%s343 + $0x34] sm:$0xf]
          %v490 = vld [vmem:[%s343 + $0x38] sm:$0xf]
          %v491 = vld [vmem:[%s343 + $0x3c] sm:$0xf]
          %v492 = vld [vmem:[%s343 + $0x40] sm:$0xf]
          %v493 = vld [vmem:[%s343 + $0x44] sm:$0xf]
          %v494 = vld [vmem:[%s343 + $0x48] sm:$0xf]
          %v495 = vld [vmem:[%s343 + $0x4c] sm:$0xf]
          %v496 = vld [vmem:[%s343 + $0x50] sm:$0xf]
          %v497 = vld [vmem:[%s343 + $0x54] sm:$0xf]
          %v498 = vld [vmem:[%s343 + $0x58] sm:$0xf]
          %v499 = vld [vmem:[%s343 + $0x5c] sm:$0xf]
          %v500 = vld [vmem:[%s343 + $0x60] sm:$0xf]
          %v501 = vld [vmem:[%s343 + $0x64] sm:$0xf]
          %v502 = vld [vmem:[%s343 + $0x68] sm:$0xf]
          %v503 = vld [vmem:[%s343 + $0x6c] sm:$0xf]
          %v504 = vld [vmem:[%s343 + $0x70] sm:$0xf]
          %v505 = vld [vmem:[%s343 + $0x74] sm:$0xf]
          %v506 = vld [vmem:[%s343 + $0x78] sm:$0xf]
          %v507 = vld [vmem:[%s343 + $0x7c] sm:$0xf]
          %v508 = vld [vmem:[%s343 + $0x80] sm:$0xf]
          %v509 = vld [vmem:[%s343 + $0x84] sm:$0xf]
          %v510 = vld [vmem:[%s343 + $0x88] sm:$0xf]
          %v511 = vld [vmem:[%s343 + $0x8c] sm:$0xf]
          %v512 = vld [vmem:[%s343 + $0x90] sm:$0xf]
          %v513 = vld [vmem:[%s343 + $0x94] sm:$0xf]
          %v514 = vld [vmem:[%s343 + $0x98] sm:$0xf]
          %v515 = vld [vmem:[%s343 + $0x9c] sm:$0xf]
          %v516 = vld [vmem:[%s343 + $0xa0] sm:$0xf]
          %v517 = vld [vmem:[%s343 + $0xa4] sm:$0xf]
          %v518 = vld [vmem:[%s343 + $0xa8] sm:$0xf]
          %v519 = vld [vmem:[%s343 + $0xac] sm:$0xf]
          %v520 = vld [vmem:[%s343 + $0xb0] sm:$0xf]
          %v521 = vld [vmem:[%s343 + $0xb4] sm:$0xf]
          %v522 = vld [vmem:[%s343 + $0xb8] sm:$0xf]
          %v523 = vld [vmem:[%s343 + $0xbc] sm:$0xf]
          %v524 = vld [vmem:[%s343 + $0xc0] sm:$0xf]
          %v525 = vld [vmem:[%s343 + $0xc4] sm:$0xf]
          %v526 = vld [vmem:[%s343 + $0xc8] sm:$0xf]
          %v527 = vld [vmem:[%s343 + $0xcc] sm:$0xf]
          %v528 = vld [vmem:[%s343 + $0xd0] sm:$0xf]
          %v529 = vld [vmem:[%s343 + $0xd4] sm:$0xf]
          %v530 = vld [vmem:[%s343 + $0xd8] sm:$0xf]
          %v531 = vld [vmem:[%s343 + $0xdc] sm:$0xf]
          %v532 = vld [vmem:[%s343 + $0xe0] sm:$0xf]
          %v533 = vld [vmem:[%s343 + $0xe4] sm:$0xf]
          %v534 = vld [vmem:[%s343 + $0xe8] sm:$0xf]
          %v535 = vld [vmem:[%s343 + $0xec] sm:$0xf]
          %v536 = vld [vmem:[%s343 + $0xf0] sm:$0xf]
          %v537 = vld [vmem:[%s343 + $0xf4] sm:$0xf]
          %v538 = vld [vmem:[%s343 + $0xf8] sm:$0xf]
          %v539 = vld [vmem:[%s343 + $0xfc] sm:$0xf]
          %v542 = vunpack.c.l.s4 1966171168
          %v543 = vunpack.c.0.s8 %v542
          %v544 = vlaneseq
          %v545 = vshrl.u32 %v544, 7
          %v546 = vsub.s32 %v543, %v545
          %v547 = vrot.slane %v475, %v546
          %v548 = vcombine.high %v547, %v547
          %v550 = vunpack.c.l.s4 1966171168
          %v551 = vunpack.c.0.s8 %v550
          %v552 = vlaneseq
          %v553 = vshrl.u32 %v552, 7
          %v554 = vsub.s32 %v551, %v553
          %v555 = vrot.slane %v547, %v554
          %v557 = vunpack.c.l.s4 1966171168
          %v558 = vunpack.c.0.s8 %v557
          %v559 = vlaneseq
          %v560 = vshrl.u32 %v559, 7
          %v561 = vsub.s32 %v558, %v560
          %v562 = vrot.slane %v548, %v561
          %v563 = vcombine.high %v555, %v555
          %v564 = vcombine.high %v562, %v562
          %v633 = vunpack.c.l.b16 %v476
          %v634 = vunpack.c.l.b16 %v477
          %v635 = vunpack.c.l.b16 %v478
          %v636 = vunpack.c.l.b16 %v479
          %v637 = vunpack.c.l.b16 %v480
          %v638 = vunpack.c.l.b16 %v481
          %v639 = vunpack.c.l.b16 %v482
          %v640 = vunpack.c.l.b16 %v483
          %v641 = vunpack.c.l.b16 %v484
          %v642 = vunpack.c.l.b16 %v485
          %v643 = vunpack.c.l.b16 %v486
          %v644 = vunpack.c.l.b16 %v487
          %v645 = vunpack.c.l.b16 %v488
          %v646 = vunpack.c.l.b16 %v489
          %v647 = vunpack.c.l.b16 %v490
          %v648 = vunpack.c.l.b16 %v491
          %v649 = vunpack.c.l.b16 %v492
          %v650 = vunpack.c.l.b16 %v493
          %v651 = vunpack.c.l.b16 %v494
          %v652 = vunpack.c.l.b16 %v495
          %v653 = vunpack.c.l.b16 %v496
          %v654 = vunpack.c.l.b16 %v497
          %v655 = vunpack.c.l.b16 %v498
          %v656 = vunpack.c.l.b16 %v499
          %v657 = vunpack.c.l.b16 %v500
          %v658 = vunpack.c.l.b16 %v501
          %v659 = vunpack.c.l.b16 %v502
          %v660 = vunpack.c.l.b16 %v503
          %v661 = vunpack.c.l.b16 %v504
          %v662 = vunpack.c.l.b16 %v505
          %v663 = vunpack.c.l.b16 %v506
          %v664 = vunpack.c.l.b16 %v507
          %v665 = vunpack.c.l.b16 %v508
          %v666 = vunpack.c.l.b16 %v509
          %v667 = vunpack.c.l.b16 %v510
          %v668 = vunpack.c.l.b16 %v511
          %v669 = vunpack.c.l.b16 %v512
          %v670 = vunpack.c.l.b16 %v513
          %v671 = vunpack.c.l.b16 %v514
          %v672 = vunpack.c.l.b16 %v515
          %v673 = vunpack.c.l.b16 %v516
          %v674 = vunpack.c.l.b16 %v517
          %v675 = vunpack.c.l.b16 %v518
          %v676 = vunpack.c.l.b16 %v519
          %v677 = vunpack.c.l.b16 %v520
          %v678 = vunpack.c.l.b16 %v521
          %v679 = vunpack.c.l.b16 %v522
          %v680 = vunpack.c.l.b16 %v523
          %v681 = vunpack.c.l.b16 %v524
          %v682 = vunpack.c.l.b16 %v525
          %v683 = vunpack.c.l.b16 %v526
          %v684 = vunpack.c.l.b16 %v527
          %v685 = vunpack.c.l.b16 %v528
          %v686 = vunpack.c.l.b16 %v529
          %v687 = vunpack.c.l.b16 %v530
          %v688 = vunpack.c.l.b16 %v531
          %v689 = vunpack.c.l.b16 %v532
          %v690 = vunpack.c.l.b16 %v533
          %v691 = vunpack.c.l.b16 %v534
          %v692 = vunpack.c.l.b16 %v535
          %v693 = vunpack.c.l.b16 %v536
          %v694 = vunpack.c.l.b16 %v537
          %v695 = vunpack.c.l.b16 %v538
          %v696 = vunpack.c.l.b16 %v539
          %v697 = vpack.c.b16 %v634, %v633
          %v698 = vpack.c.b16 %v636, %v635
          %v699 = vpack.c.b16 %v638, %v637
          %v700 = vpack.c.b16 %v640, %v639
          %v701 = vpack.c.b16 %v642, %v641
          %v702 = vpack.c.b16 %v644, %v643
          %v703 = vpack.c.b16 %v646, %v645
          %v704 = vpack.c.b16 %v648, %v647
          %v705 = vpack.c.b16 %v650, %v649
          %v706 = vpack.c.b16 %v652, %v651
          %v707 = vpack.c.b16 %v654, %v653
          %v708 = vpack.c.b16 %v656, %v655
          %v709 = vpack.c.b16 %v658, %v657
          %v710 = vpack.c.b16 %v660, %v659
          %v711 = vpack.c.b16 %v662, %v661
          %v712 = vpack.c.b16 %v664, %v663
          %v713 = vpack.c.b16 %v666, %v665
          %v714 = vpack.c.b16 %v668, %v667
          %v715 = vpack.c.b16 %v670, %v669
          %v716 = vpack.c.b16 %v672, %v671
          %v717 = vpack.c.b16 %v674, %v673
          %v718 = vpack.c.b16 %v676, %v675
          %v719 = vpack.c.b16 %v678, %v677
          %v720 = vpack.c.b16 %v680, %v679
          %v721 = vpack.c.b16 %v682, %v681
          %v722 = vpack.c.b16 %v684, %v683
          %v723 = vpack.c.b16 %v686, %v685
          %v724 = vpack.c.b16 %v688, %v687
          %v725 = vpack.c.b16 %v690, %v689
          %v726 = vpack.c.b16 %v692, %v691
          %v727 = vpack.c.b16 %v694, %v693
          %v728 = vpack.c.b16 %v696, %v695
          %761 = vmatprep.subr.bf16.mxu0 0
          %762 = vmatpush1.bf16.msra.mxu0 %v704
          %763 = vmatprep.subr.bf16.mxu0 0
          %764 = vmatpush1.bf16.msra.mxu0 %v703
          %765 = vmatprep.subr.bf16.mxu0 0
          %766 = vmatpush1.bf16.msra.mxu0 %v702
          %767 = vmatprep.subr.bf16.mxu0 0
          %768 = vmatpush1.bf16.msra.mxu0 %v701
          %769 = vmatprep.subr.bf16.mxu0 0
          %770 = vmatpush1.bf16.msra.mxu0 %v700
          %771 = vmatprep.subr.bf16.mxu0 0
          %772 = vmatpush1.bf16.msra.mxu0 %v699
          %773 = vmatprep.subr.bf16.mxu0 0
          %774 = vmatpush1.bf16.msra.mxu0 %v698
          %775 = vmatprep.subr.bf16.mxu0 0
          %776 = vmatpush1.bf16.msra.mxu0 %v697
          %777 = vmatprep.subr.bf16.mxu0 0
          %778 = vmatpush2.bf16.msra.mxu0 %v712
          %779 = vmatprep.subr.bf16.mxu0 0
          %780 = vmatpush2.bf16.msra.mxu0 %v711
          %781 = vmatprep.subr.bf16.mxu0 0
          %782 = vmatpush2.bf16.msra.mxu0 %v710
          %783 = vmatprep.subr.bf16.mxu0 0
          %784 = vmatpush2.bf16.msra.mxu0 %v709
          %785 = vmatprep.subr.bf16.mxu0 0
          %786 = vmatpush2.bf16.msra.mxu0 %v708
          %787 = vmatprep.subr.bf16.mxu0 0
          %788 = vmatpush2.bf16.msra.mxu0 %v707
          %789 = vmatprep.subr.bf16.mxu0 0
          %790 = vmatpush2.bf16.msra.mxu0 %v706
          %791 = vmatprep.subr.bf16.mxu0 0
          %792 = vmatpush2.bf16.msra.mxu0 %v705
          %793 = vmatprep.mubr.bf16.mxu0 %v562
          %794 = vmatmul.mubr.bf16.gmra.mxu0 %v555
          %v795 = vpop.f32.mrf.mxu0
          %v796 = vadd.f32 0.0, %v795
          %v797 = vpop.f32.mrf.mxu0
          %v798 = vpop.f32.mrf.mxu0
          %v799 = vpop.f32.mrf.mxu0
          %800 = vdwg.mxu0
          %801 = vmatprep.subr.bf16.mxu0 0
          %802 = vmatpush1.bf16.msra.mxu0 %v720
          %803 = vmatprep.subr.bf16.mxu0 0
          %804 = vmatpush1.bf16.msra.mxu0 %v719
          %805 = vmatprep.subr.bf16.mxu0 0
          %806 = vmatpush1.bf16.msra.mxu0 %v718
          %807 = vmatprep.subr.bf16.mxu0 0
          %808 = vmatpush1.bf16.msra.mxu0 %v717
          %809 = vmatprep.subr.bf16.mxu0 0
          %810 = vmatpush1.bf16.msra.mxu0 %v716
          %811 = vmatprep.subr.bf16.mxu0 0
          %812 = vmatpush1.bf16.msra.mxu0 %v715
          %813 = vmatprep.subr.bf16.mxu0 0
          %814 = vmatpush1.bf16.msra.mxu0 %v714
          %815 = vmatprep.subr.bf16.mxu0 0
          %816 = vmatpush1.bf16.msra.mxu0 %v713
          %817 = vmatprep.subr.bf16.mxu0 0
          %818 = vmatpush2.bf16.msra.mxu0 %v728
          %819 = vmatprep.subr.bf16.mxu0 0
          %820 = vmatpush2.bf16.msra.mxu0 %v727
          %821 = vmatprep.subr.bf16.mxu0 0
          %822 = vmatpush2.bf16.msra.mxu0 %v726
          %823 = vmatprep.subr.bf16.mxu0 0
          %824 = vmatpush2.bf16.msra.mxu0 %v725
          %825 = vmatprep.subr.bf16.mxu0 0
          %826 = vmatpush2.bf16.msra.mxu0 %v724
          %827 = vmatprep.subr.bf16.mxu0 0
          %828 = vmatpush2.bf16.msra.mxu0 %v723
          %829 = vmatprep.subr.bf16.mxu0 0
          %830 = vmatpush2.bf16.msra.mxu0 %v722
          %831 = vmatprep.subr.bf16.mxu0 0
          %832 = vmatpush2.bf16.msra.mxu0 %v721
          %833 = vmatprep.mubr.bf16.mxu0 %v564
          %834 = vmatmul.mubr.bf16.gmra.mxu0 %v563
          %v835 = vpop.f32.mrf.mxu0
          %v836 = vadd.f32 %v796, %v835
          %v837 = vpop.f32.mrf.mxu0
          %v838 = vpop.f32.mrf.mxu0
          %v839 = vpop.f32.mrf.mxu0
          %840 = vdwg.mxu0
          %v841 = vld [vmem:[#allocation2] sm:$0x3]
          %842 = vmatprep.subr.mxu0 0.0
          %843 = vmatpush1.xpose.msra.mxu0 0.0
          %844 = vmatprep.subr.mxu0 0.0
          %845 = vmatpush1.xpose.msra.mxu0 0.0
          %846 = vmatprep.subr.mxu0 0.0
          %847 = vmatpush1.xpose.msra.mxu0 0.0
          %848 = vmatprep.subr.mxu0 0.0
          %849 = vmatpush1.xpose.msra.mxu0 0.0
          %850 = vmatprep.subr.mxu0 0.0
          %851 = vmatpush1.xpose.msra.mxu0 0.0
          %852 = vmatprep.subr.mxu0 0.0
          %853 = vmatpush1.xpose.msra.mxu0 0.0
          %854 = vmatprep.subr.mxu0 0.0
          %855 = vmatpush1.xpose.msra.mxu0 0.0
          %856 = vmatprep.subr.mxu0 0.0
          %857 = vmatpush1.xpose.msra.mxu0 0.0
          %858 = vmatprep.subr.mxu0 0.0
          %859 = vmatpush1.xpose.msra.mxu0 0.0
          %860 = vmatprep.subr.mxu0 0.0
          %861 = vmatpush1.xpose.msra.mxu0 0.0
          %862 = vmatprep.subr.mxu0 0.0
          %863 = vmatpush1.xpose.msra.mxu0 0.0
          %864 = vmatprep.subr.mxu0 0.0
          %865 = vmatpush1.xpose.msra.mxu0 0.0
          %866 = vmatprep.subr.mxu0 0.0
          %867 = vmatpush1.xpose.msra.mxu0 0.0
          %868 = vmatprep.subr.mxu0 0.0
          %869 = vmatpush1.xpose.msra.mxu0 0.0
          %870 = vmatprep.subr.mxu0 0.0
          %871 = vmatpush1.xpose.msra.mxu0 0.0
          %872 = vmatprep.subr.mxu0 0.0
          %873 = vmatpush1.xpose.msra.mxu0 %v836
          %874 = vmatprep.subr.mxu0 0.0
          %875 = vmatpush2.xpose.msra.mxu0 0.0
          %876 = vmatprep.subr.mxu0 0.0
          %877 = vmatpush2.xpose.msra.mxu0 0.0
          %878 = vmatprep.subr.mxu0 0.0
          %879 = vmatpush2.xpose.msra.mxu0 0.0
          %880 = vmatprep.subr.mxu0 0.0
          %881 = vmatpush2.xpose.msra.mxu0 0.0
          %882 = vmatprep.subr.mxu0 0.0
          %883 = vmatpush2.xpose.msra.mxu0 0.0
          %884 = vmatprep.subr.mxu0 0.0
          %885 = vmatpush2.xpose.msra.mxu0 0.0
          %886 = vmatprep.subr.mxu0 0.0
          %887 = vmatpush2.xpose.msra.mxu0 0.0
          %888 = vmatprep.subr.mxu0 0.0
          %889 = vmatpush2.xpose.msra.mxu0 0.0
          %890 = vmatprep.subr.mxu0 0.0
          %891 = vmatpush2.xpose.msra.mxu0 0.0
          %892 = vmatprep.subr.mxu0 0.0
          %893 = vmatpush2.xpose.msra.mxu0 0.0
          %894 = vmatprep.subr.mxu0 0.0
          %895 = vmatpush2.xpose.msra.mxu0 0.0
          %896 = vmatprep.subr.mxu0 0.0
          %897 = vmatpush2.xpose.msra.mxu0 0.0
          %898 = vmatprep.subr.mxu0 0.0
          %899 = vmatpush2.xpose.msra.mxu0 0.0
          %900 = vmatprep.subr.mxu0 0.0
          %901 = vmatpush2.xpose.msra.mxu0 0.0
          %902 = vmatprep.subr.mxu0 0.0
          %903 = vmatpush2.xpose.msra.mxu0 0.0
          %904 = vmatprep.subr.mxu0 0.0
          %905 = vmatpush2.xpose.msra.mxu0 0.0
          %906 = vmatprep.mubr.f32.mxu0 0.0
          %907 = vmatmul.mubr.f32.gmra.mxu0 %v470
          %v908 = vpop.f32.mrf.mxu0
          %v909 = vadd.f32 0.0, %v908
          %v910 = vpop.f32.mrf.mxu0
          %911 = vdwg.mxu0
          %v912 = vadd.f32 %v841, %v909
          %vm913 = vcmask 9216
          %914 = vst.msk [vmem:[#allocation2] sm:$0x3] %vm913, %v912
        $region68: #{tpu_custom_call.1} parent=39 // pred_fallthru
          _
        %p915 = scmp.eq.s32.totalorder %s26, 3
        // Predicated region
        $region69: #{tpu_custom_call.1} parent=39 // pred_check
          %p916 = pneg %p915
        $region70: #{tpu_custom_call.1} parent=39 // pred_check_branch
          %918 = sbr.rel (%p916) target = $region72
        $region71: #{tpu_custom_call.1} parent=39 // pred_region
          %v919 = vld [vmem:[#allocation2] sm:$0x3]
          %v920 = vmul.f32 %v919, 0.044194173
          %vm921 = vcmask 9216
          %v922 = vsel %vm921, %v920, -inf
          %923 = vmax.xlane.f32.xlu0 %v922
          %v924 = vpop.xlane.xlu0 %923
          %v925 = vsub.f32 %v920, %v924
          %v926 = vmul.f32 %v925, 1.442695
          %v927 = vpow.pop %v926
          %v928 = vsel %vm921, %v927, 0.0
          %929 = vadd.xlane.f32.xlu0 %v928
          %v930 = vpop.xlane.xlu0 %929
          %v931 = vrcp.pop %v930
          %v932 = vmul.f32 %v927, %v931
          %933 = vst.msk [vmem:[#allocation2] sm:$0x3] %vm921, %v932
        $region72: #{tpu_custom_call.1} parent=39 // pred_fallthru
          _
        %p934 = scmp.ge.s32.totalorder %s26, 3
        // Predicated region
        $region73: #{tpu_custom_call.1} parent=39 // pred_check
          %p935 = pneg %p934
        $region74: #{tpu_custom_call.1} parent=39 // pred_check_branch
          %937 = sbr.rel (%p935) target = $region76
        $region75: #{tpu_custom_call.1} parent=39 // pred_region
          %v938 = vld [vmem:[#allocation6] sm:$0xf]
          %v939 = vld [vmem:[%s352] sm:$0xf]
          %v940 = vld [vmem:[%s352 + $0x4] sm:$0xf]
          %v941 = vld [vmem:[%s352 + $0x8] sm:$0xf]
          %v942 = vld [vmem:[%s352 + $0xc] sm:$0xf]
          %v943 = vld [vmem:[%s352 + $0x10] sm:$0xf]
          %v944 = vld [vmem:[%s352 + $0x14] sm:$0xf]
          %v945 = vld [vmem:[%s352 + $0x18] sm:$0xf]
          %v946 = vld [vmem:[%s352 + $0x1c] sm:$0xf]
          %v947 = vld [vmem:[%s352 + $0x20] sm:$0xf]
          %v948 = vld [vmem:[%s352 + $0x24] sm:$0xf]
          %v949 = vld [vmem:[%s352 + $0x28] sm:$0xf]
          %v950 = vld [vmem:[%s352 + $0x2c] sm:$0xf]
          %v951 = vld [vmem:[%s352 + $0x30] sm:$0xf]
          %v952 = vld [vmem:[%s352 + $0x34] sm:$0xf]
          %v953 = vld [vmem:[%s352 + $0x38] sm:$0xf]
          %v954 = vld [vmem:[%s352 + $0x3c] sm:$0xf]
          %v955 = vld [vmem:[%s352 + $0x40] sm:$0xf]
          %v956 = vld [vmem:[%s352 + $0x44] sm:$0xf]
          %v957 = vld [vmem:[%s352 + $0x48] sm:$0xf]
          %v958 = vld [vmem:[%s352 + $0x4c] sm:$0xf]
          %v959 = vld [vmem:[%s352 + $0x50] sm:$0xf]
          %v960 = vld [vmem:[%s352 + $0x54] sm:$0xf]
          %v961 = vld [vmem:[%s352 + $0x58] sm:$0xf]
          %v962 = vld [vmem:[%s352 + $0x5c] sm:$0xf]
          %v963 = vld [vmem:[%s352 + $0x60] sm:$0xf]
          %v964 = vld [vmem:[%s352 + $0x64] sm:$0xf]
          %v965 = vld [vmem:[%s352 + $0x68] sm:$0xf]
          %v966 = vld [vmem:[%s352 + $0x6c] sm:$0xf]
          %v967 = vld [vmem:[%s352 + $0x70] sm:$0xf]
          %v968 = vld [vmem:[%s352 + $0x74] sm:$0xf]
          %v969 = vld [vmem:[%s352 + $0x78] sm:$0xf]
          %v970 = vld [vmem:[%s352 + $0x7c] sm:$0xf]
          %v971 = vld [vmem:[%s352 + $0x80] sm:$0xf]
          %v972 = vld [vmem:[%s352 + $0x84] sm:$0xf]
          %v973 = vld [vmem:[%s352 + $0x88] sm:$0xf]
          %v974 = vld [vmem:[%s352 + $0x8c] sm:$0xf]
          %v975 = vld [vmem:[%s352 + $0x90] sm:$0xf]
          %v976 = vld [vmem:[%s352 + $0x94] sm:$0xf]
          %v977 = vld [vmem:[%s352 + $0x98] sm:$0xf]
          %v978 = vld [vmem:[%s352 + $0x9c] sm:$0xf]
          %v979 = vld [vmem:[%s352 + $0xa0] sm:$0xf]
          %v980 = vld [vmem:[%s352 + $0xa4] sm:$0xf]
          %v981 = vld [vmem:[%s352 + $0xa8] sm:$0xf]
          %v982 = vld [vmem:[%s352 + $0xac] sm:$0xf]
          %v983 = vld [vmem:[%s352 + $0xb0] sm:$0xf]
          %v984 = vld [vmem:[%s352 + $0xb4] sm:$0xf]
          %v985 = vld [vmem:[%s352 + $0xb8] sm:$0xf]
          %v986 = vld [vmem:[%s352 + $0xbc] sm:$0xf]
          %v987 = vld [vmem:[%s352 + $0xc0] sm:$0xf]
          %v988 = vld [vmem:[%s352 + $0xc4] sm:$0xf]
          %v989 = vld [vmem:[%s352 + $0xc8] sm:$0xf]
          %v990 = vld [vmem:[%s352 + $0xcc] sm:$0xf]
          %v991 = vld [vmem:[%s352 + $0xd0] sm:$0xf]
          %v992 = vld [vmem:[%s352 + $0xd4] sm:$0xf]
          %v993 = vld [vmem:[%s352 + $0xd8] sm:$0xf]
          %v994 = vld [vmem:[%s352 + $0xdc] sm:$0xf]
          %v995 = vld [vmem:[%s352 + $0xe0] sm:$0xf]
          %v996 = vld [vmem:[%s352 + $0xe4] sm:$0xf]
          %v997 = vld [vmem:[%s352 + $0xe8] sm:$0xf]
          %v998 = vld [vmem:[%s352 + $0xec] sm:$0xf]
          %v999 = vld [vmem:[%s352 + $0xf0] sm:$0xf]
          %v1000 = vld [vmem:[%s352 + $0xf4] sm:$0xf]
          %v1001 = vld [vmem:[%s352 + $0xf8] sm:$0xf]
          %v1002 = vld [vmem:[%s352 + $0xfc] sm:$0xf]
          %v1005 = vunpack.c.l.s4 1966171168
          %v1006 = vunpack.c.0.s8 %v1005
          %v1007 = vlaneseq
          %v1008 = vshrl.u32 %v1007, 7
          %v1009 = vsub.s32 %v1006, %v1008
          %v1010 = vrot.slane %v938, %v1009
          %v1011 = vcombine.high %v1010, %v1010
          %v1013 = vunpack.c.l.s4 1966171168
          %v1014 = vunpack.c.0.s8 %v1013
          %v1015 = vlaneseq
          %v1016 = vshrl.u32 %v1015, 7
          %v1017 = vsub.s32 %v1014, %v1016
          %v1018 = vrot.slane %v1010, %v1017
          %v1020 = vunpack.c.l.s4 1966171168
          %v1021 = vunpack.c.0.s8 %v1020
          %v1022 = vlaneseq
          %v1023 = vshrl.u32 %v1022, 7
          %v1024 = vsub.s32 %v1021, %v1023
          %v1025 = vrot.slane %v1011, %v1024
          %v1026 = vcombine.high %v1018, %v1018
          %v1027 = vcombine.high %v1025, %v1025
          %v1096 = vunpack.c.l.b16 %v939
          %v1097 = vunpack.c.l.b16 %v940
          %v1098 = vunpack.c.l.b16 %v941
          %v1099 = vunpack.c.l.b16 %v942
          %v1100 = vunpack.c.l.b16 %v943
          %v1101 = vunpack.c.l.b16 %v944
          %v1102 = vunpack.c.l.b16 %v945
          %v1103 = vunpack.c.l.b16 %v946
          %v1104 = vunpack.c.l.b16 %v947
          %v1105 = vunpack.c.l.b16 %v948
          %v1106 = vunpack.c.l.b16 %v949
          %v1107 = vunpack.c.l.b16 %v950
          %v1108 = vunpack.c.l.b16 %v951
          %v1109 = vunpack.c.l.b16 %v952
          %v1110 = vunpack.c.l.b16 %v953
          %v1111 = vunpack.c.l.b16 %v954
          %v1112 = vunpack.c.l.b16 %v955
          %v1113 = vunpack.c.l.b16 %v956
          %v1114 = vunpack.c.l.b16 %v957
          %v1115 = vunpack.c.l.b16 %v958
          %v1116 = vunpack.c.l.b16 %v959
          %v1117 = vunpack.c.l.b16 %v960
          %v1118 = vunpack.c.l.b16 %v961
          %v1119 = vunpack.c.l.b16 %v962
          %v1120 = vunpack.c.l.b16 %v963
          %v1121 = vunpack.c.l.b16 %v964
          %v1122 = vunpack.c.l.b16 %v965
          %v1123 = vunpack.c.l.b16 %v966
          %v1124 = vunpack.c.l.b16 %v967
          %v1125 = vunpack.c.l.b16 %v968
          %v1126 = vunpack.c.l.b16 %v969
          %v1127 = vunpack.c.l.b16 %v970
          %v1128 = vunpack.c.l.b16 %v971
          %v1129 = vunpack.c.l.b16 %v972
          %v1130 = vunpack.c.l.b16 %v973
          %v1131 = vunpack.c.l.b16 %v974
          %v1132 = vunpack.c.l.b16 %v975
          %v1133 = vunpack.c.l.b16 %v976
          %v1134 = vunpack.c.l.b16 %v977
          %v1135 = vunpack.c.l.b16 %v978
          %v1136 = vunpack.c.l.b16 %v979
          %v1137 = vunpack.c.l.b16 %v980
          %v1138 = vunpack.c.l.b16 %v981
          %v1139 = vunpack.c.l.b16 %v982
          %v1140 = vunpack.c.l.b16 %v983
          %v1141 = vunpack.c.l.b16 %v984
          %v1142 = vunpack.c.l.b16 %v985
          %v1143 = vunpack.c.l.b16 %v986
          %v1144 = vunpack.c.l.b16 %v987
          %v1145 = vunpack.c.l.b16 %v988
          %v1146 = vunpack.c.l.b16 %v989
          %v1147 = vunpack.c.l.b16 %v990
          %v1148 = vunpack.c.l.b16 %v991
          %v1149 = vunpack.c.l.b16 %v992
          %v1150 = vunpack.c.l.b16 %v993
          %v1151 = vunpack.c.l.b16 %v994
          %v1152 = vunpack.c.l.b16 %v995
          %v1153 = vunpack.c.l.b16 %v996
          %v1154 = vunpack.c.l.b16 %v997
          %v1155 = vunpack.c.l.b16 %v998
          %v1156 = vunpack.c.l.b16 %v999
          %v1157 = vunpack.c.l.b16 %v1000
          %v1158 = vunpack.c.l.b16 %v1001
          %v1159 = vunpack.c.l.b16 %v1002
          %v1160 = vpack.c.b16 %v1097, %v1096
          %v1161 = vpack.c.b16 %v1099, %v1098
          %v1162 = vpack.c.b16 %v1101, %v1100
          %v1163 = vpack.c.b16 %v1103, %v1102
          %v1164 = vpack.c.b16 %v1105, %v1104
          %v1165 = vpack.c.b16 %v1107, %v1106
          %v1166 = vpack.c.b16 %v1109, %v1108
          %v1167 = vpack.c.b16 %v1111, %v1110
          %v1168 = vpack.c.b16 %v1113, %v1112
          %v1169 = vpack.c.b16 %v1115, %v1114
          %v1170 = vpack.c.b16 %v1117, %v1116
          %v1171 = vpack.c.b16 %v1119, %v1118
          %v1172 = vpack.c.b16 %v1121, %v1120
          %v1173 = vpack.c.b16 %v1123, %v1122
          %v1174 = vpack.c.b16 %v1125, %v1124
          %v1175 = vpack.c.b16 %v1127, %v1126
          %v1176 = vpack.c.b16 %v1129, %v1128
          %v1177 = vpack.c.b16 %v1131, %v1130
          %v1178 = vpack.c.b16 %v1133, %v1132
          %v1179 = vpack.c.b16 %v1135, %v1134
          %v1180 = vpack.c.b16 %v1137, %v1136
          %v1181 = vpack.c.b16 %v1139, %v1138
          %v1182 = vpack.c.b16 %v1141, %v1140
          %v1183 = vpack.c.b16 %v1143, %v1142
          %v1184 = vpack.c.b16 %v1145, %v1144
          %v1185 = vpack.c.b16 %v1147, %v1146
          %v1186 = vpack.c.b16 %v1149, %v1148
          %v1187 = vpack.c.b16 %v1151, %v1150
          %v1188 = vpack.c.b16 %v1153, %v1152
          %v1189 = vpack.c.b16 %v1155, %v1154
          %v1190 = vpack.c.b16 %v1157, %v1156
          %v1191 = vpack.c.b16 %v1159, %v1158
          %1224 = vmatprep.subr.bf16.mxu0 0
          %1225 = vmatpush1.bf16.msra.mxu0 %v1167
          %1226 = vmatprep.subr.bf16.mxu0 0
          %1227 = vmatpush1.bf16.msra.mxu0 %v1166
          %1228 = vmatprep.subr.bf16.mxu0 0
          %1229 = vmatpush1.bf16.msra.mxu0 %v1165
          %1230 = vmatprep.subr.bf16.mxu0 0
          %1231 = vmatpush1.bf16.msra.mxu0 %v1164
          %1232 = vmatprep.subr.bf16.mxu0 0
          %1233 = vmatpush1.bf16.msra.mxu0 %v1163
          %1234 = vmatprep.subr.bf16.mxu0 0
          %1235 = vmatpush1.bf16.msra.mxu0 %v1162
          %1236 = vmatprep.subr.bf16.mxu0 0
          %1237 = vmatpush1.bf16.msra.mxu0 %v1161
          %1238 = vmatprep.subr.bf16.mxu0 0
          %1239 = vmatpush1.bf16.msra.mxu0 %v1160
          %1240 = vmatprep.subr.bf16.mxu0 0
          %1241 = vmatpush2.bf16.msra.mxu0 %v1175
          %1242 = vmatprep.subr.bf16.mxu0 0
          %1243 = vmatpush2.bf16.msra.mxu0 %v1174
          %1244 = vmatprep.subr.bf16.mxu0 0
          %1245 = vmatpush2.bf16.msra.mxu0 %v1173
          %1246 = vmatprep.subr.bf16.mxu0 0
          %1247 = vmatpush2.bf16.msra.mxu0 %v1172
          %1248 = vmatprep.subr.bf16.mxu0 0
          %1249 = vmatpush2.bf16.msra.mxu0 %v1171
          %1250 = vmatprep.subr.bf16.mxu0 0
          %1251 = vmatpush2.bf16.msra.mxu0 %v1170
          %1252 = vmatprep.subr.bf16.mxu0 0
          %1253 = vmatpush2.bf16.msra.mxu0 %v1169
          %1254 = vmatprep.subr.bf16.mxu0 0
          %1255 = vmatpush2.bf16.msra.mxu0 %v1168
          %1256 = vmatprep.mubr.bf16.mxu0 %v1025
          %1257 = vmatmul.mubr.bf16.gmra.mxu0 %v1018
          %v1258 = vpop.f32.mrf.mxu0
          %v1259 = vadd.f32 0.0, %v1258
          %v1260 = vpop.f32.mrf.mxu0
          %v1261 = vpop.f32.mrf.mxu0
          %v1262 = vpop.f32.mrf.mxu0
          %1263 = vdwg.mxu0
          %1264 = vmatprep.subr.bf16.mxu0 0
          %1265 = vmatpush1.bf16.msra.mxu0 %v1183
          %1266 = vmatprep.subr.bf16.mxu0 0
          %1267 = vmatpush1.bf16.msra.mxu0 %v1182
          %1268 = vmatprep.subr.bf16.mxu0 0
          %1269 = vmatpush1.bf16.msra.mxu0 %v1181
          %1270 = vmatprep.subr.bf16.mxu0 0
          %1271 = vmatpush1.bf16.msra.mxu0 %v1180
          %1272 = vmatprep.subr.bf16.mxu0 0
          %1273 = vmatpush1.bf16.msra.mxu0 %v1179
          %1274 = vmatprep.subr.bf16.mxu0 0
          %1275 = vmatpush1.bf16.msra.mxu0 %v1178
          %1276 = vmatprep.subr.bf16.mxu0 0
          %1277 = vmatpush1.bf16.msra.mxu0 %v1177
          %1278 = vmatprep.subr.bf16.mxu0 0
          %1279 = vmatpush1.bf16.msra.mxu0 %v1176
          %1280 = vmatprep.subr.bf16.mxu0 0
          %1281 = vmatpush2.bf16.msra.mxu0 %v1191
          %1282 = vmatprep.subr.bf16.mxu0 0
          %1283 = vmatpush2.bf16.msra.mxu0 %v1190
          %1284 = vmatprep.subr.bf16.mxu0 0
          %1285 = vmatpush2.bf16.msra.mxu0 %v1189
          %1286 = vmatprep.subr.bf16.mxu0 0
          %1287 = vmatpush2.bf16.msra.mxu0 %v1188
          %1288 = vmatprep.subr.bf16.mxu0 0
          %1289 = vmatpush2.bf16.msra.mxu0 %v1187
          %1290 = vmatprep.subr.bf16.mxu0 0
          %1291 = vmatpush2.bf16.msra.mxu0 %v1186
          %1292 = vmatprep.subr.bf16.mxu0 0
          %1293 = vmatpush2.bf16.msra.mxu0 %v1185
          %1294 = vmatprep.subr.bf16.mxu0 0
          %1295 = vmatpush2.bf16.msra.mxu0 %v1184
          %1296 = vmatprep.mubr.bf16.mxu0 %v1027
          %1297 = vmatmul.mubr.bf16.gmra.mxu0 %v1026
          %v1298 = vpop.f32.mrf.mxu0
          %v1299 = vadd.f32 %v1259, %v1298
          %v1300 = vpop.f32.mrf.mxu0
          %v1301 = vpop.f32.mrf.mxu0
          %v1302 = vpop.f32.mrf.mxu0
          %1303 = vdwg.mxu0
          %v1304 = vld [vmem:[#allocation2] sm:$0x3]
          %vm1305 = vcmask 15360
          %v1307 = vsel %vm1305, %v1304, 0
          %vm1309 = vcmask 1041408
          %v1311 = vsel %vm1309, %v1299, 0
          %1313 = vmatprep.subr.mxu0 0.0
          %1314 = vmatpush1.msra.mxu0 0.0
          %1315 = vmatprep.subr.mxu0 0.0
          %1316 = vmatpush1.msra.mxu0 0.0
          %1317 = vmatprep.subr.mxu0 0.0
          %1318 = vmatpush1.msra.mxu0 0.0
          %1319 = vmatprep.subr.mxu0 0.0
          %1320 = vmatpush1.msra.mxu0 0.0
          %1321 = vmatprep.subr.mxu0 0.0
          %1322 = vmatpush1.msra.mxu0 0.0
          %1323 = vmatprep.subr.mxu0 0.0
          %1324 = vmatpush1.msra.mxu0 0.0
          %1325 = vmatprep.subr.mxu0 0.0
          %1326 = vmatpush1.msra.mxu0 0.0
          %1327 = vmatprep.subr.mxu0 0.0
          %1328 = vmatpush1.msra.mxu0 0.0
          %1329 = vmatprep.subr.mxu0 0.0
          %1330 = vmatpush1.msra.mxu0 0.0
          %1331 = vmatprep.subr.mxu0 0.0
          %1332 = vmatpush1.msra.mxu0 0.0
          %1333 = vmatprep.subr.mxu0 0.0
          %1334 = vmatpush1.msra.mxu0 0.0
          %1335 = vmatprep.subr.mxu0 0.0
          %1336 = vmatpush1.msra.mxu0 0.0
          %1337 = vmatprep.subr.mxu0 0.0
          %1338 = vmatpush1.msra.mxu0 0.0
          %1339 = vmatprep.subr.mxu0 0.0
          %1340 = vmatpush1.msra.mxu0 0.0
          %1341 = vmatprep.subr.mxu0 0.0
          %1342 = vmatpush1.msra.mxu0 0.0
          %1343 = vmatprep.subr.mxu0 0.0
          %1344 = vmatpush1.msra.mxu0 %v1311
          %1345 = vmatprep.subr.mxu0 0.0
          %1346 = vmatpush2.msra.mxu0 0.0
          %1347 = vmatprep.subr.mxu0 0.0
          %1348 = vmatpush2.msra.mxu0 0.0
          %1349 = vmatprep.subr.mxu0 0.0
          %1350 = vmatpush2.msra.mxu0 0.0
          %1351 = vmatprep.subr.mxu0 0.0
          %1352 = vmatpush2.msra.mxu0 0.0
          %1353 = vmatprep.subr.mxu0 0.0
          %1354 = vmatpush2.msra.mxu0 0.0
          %1355 = vmatprep.subr.mxu0 0.0
          %1356 = vmatpush2.msra.mxu0 0.0
          %1357 = vmatprep.subr.mxu0 0.0
          %1358 = vmatpush2.msra.mxu0 0.0
          %1359 = vmatprep.subr.mxu0 0.0
          %1360 = vmatpush2.msra.mxu0 0.0
          %1361 = vmatprep.subr.mxu0 0.0
          %1362 = vmatpush2.msra.mxu0 0.0
          %1363 = vmatprep.subr.mxu0 0.0
          %1364 = vmatpush2.msra.mxu0 0.0
          %1365 = vmatprep.subr.mxu0 0.0
          %1366 = vmatpush2.msra.mxu0 0.0
          %1367 = vmatprep.subr.mxu0 0.0
          %1368 = vmatpush2.msra.mxu0 0.0
          %1369 = vmatprep.subr.mxu0 0.0
          %1370 = vmatpush2.msra.mxu0 0.0
          %1371 = vmatprep.subr.mxu0 0.0
          %1372 = vmatpush2.msra.mxu0 0.0
          %1373 = vmatprep.subr.mxu0 0.0
          %1374 = vmatpush2.msra.mxu0 0.0
          %1375 = vmatprep.subr.mxu0 0.0
          %1376 = vmatpush2.msra.mxu0 0.0
          %1377 = vmatprep.mubr.f32.mxu0 0.0
          %1378 = vmatmul.mubr.f32.gmra.mxu0 %v1307
          %v1379 = vpop.f32.mrf.mxu0
          %v1380 = vadd.f32 0.0, %v1379
          %v1381 = vpop.f32.mrf.mxu0
          %1382 = vdwg.mxu0
          %1383 = vst [vmem:[%s388] sm:$0x3] %v1380
        $region76: #{tpu_custom_call.1} parent=39 // pred_fallthru
          _
        %s1384 = sand.u32 %s189, 1
        %s1385 = scalar_lea.sflag [#allocation5], %s1384
        %s1386 = sand.u32 %s189, 1
        %s1387 = smul.addr %s1386, 2
        %s1388 = scalar_lea.vmem [#allocation11], %s1387
        // Predicated region
        $region77: #{tpu_custom_call.1} parent=39 // pred_check
          %p1389 = pneg %p199
        $region78: #{tpu_custom_call.1} parent=39 // pred_check_branch
          %1391 = sbr.rel (%p1389) target = $region80
        $region79: #{tpu_custom_call.1} parent=39 // pred_region
          %s1392 = smul.u32 %s25, 4
          %s1393 = ssub.s32 %s26, 3
          %p1394 = scmp.gt.s32.totalorder %s1393, 0
          %s1395 = scalar_select %p1394, %s1393, 0
          %s1396 = sadd.s32 %s1392, %s1395
          %s1398 = ssub.s32 32, 32
          %1399 = vsyncadd %s1385, %s1398
          %s1400 = smul.addr %s1396, 32
          %s1401 = scalar_lea.hbm %s5, %s1400
          %s1403 = sshll.u32 %s1388, 4
          %s1404 = int_to_ptr.vmem [resolvable:$true] %s1403
          %1406 = dma.vmem_to_hbm [thread:$0]  %s1404, 32, %s1401, %s1385
        $region80: #{tpu_custom_call.1} parent=39 // pred_fallthru
          _
      $region40: #{tpu_custom_call.1} parent=5 // pred_fallthru
        _
      %p1407 = scmp.le.s32.totalorder 2, %s16
      // Predicated region
      $region81: #{tpu_custom_call.1} parent=5 // pred_check
        %p1408 = pneg %p1407
      $region82: #{tpu_custom_call.1} parent=5 // pred_check_branch
        %1410 = sbr.rel (%p1408) target = $region84
      $region83: #{tpu_custom_call.1} parent=5 // pred_region
        %s1411 = ssub.s32 %s16, 2
        // Predicated region
        $region85: #{tpu_custom_call.1} parent=83 // pred_check
          %p1412 = pneg %p205
        $region86: #{tpu_custom_call.1} parent=83 // pred_check_branch
          %1414 = sbr.rel (%p1412) target = $region88
        $region87: #{tpu_custom_call.1} parent=83 // pred_region
          %s1415 = sand.u32 %s190, 1
          %s1416 = scalar_lea.sflag [#allocation5], %s1415
          %s1417 = sand.u32 %s190, 1
          %s1418 = smul.addr %s1417, 2
          %s1419 = scalar_lea.vmem [#allocation11], %s1418
          %1420 = dma.done %s1416, 32
        $region88: #{tpu_custom_call.1} parent=83 // pred_fallthru
          _
      $region84: #{tpu_custom_call.1} parent=5 // pred_fallthru
        _
    $region6: #{tpu_custom_call.1} parent=1 // loop_footer
      %s20 = sadd.s32 1, %s16
    $region7: #{tpu_custom_call.1} parent=1 // loop_footer_branch
      %15 = sbr.rel target = $region3
    $region8: #{tpu_custom_call.1} parent=1 // loop_exit
      _
    %1421 = vsyncpa [#allocation4], 1
    %s1422 = scalar_lea.sflag [#allocation4], 1
    %1423 = vsyncpa %s1422, 1
    %1424 = vsyncpa [#allocation7], 1
    %1425 = vsyncpa [#allocation5], 1
    %s1426 = scalar_lea.sflag [#allocation5], 1
    %1427 = vsyncpa %s1426, 1

// kernel: tpu_custom_call.1
$region0: #{tpu_custom_call.1}
  #allocation0 [shape = 'u32[]', space=smem, size = 0x4, offset = 0x4, fixed_abs, tag = 'smem constant byte address 0x4 - core index']
  #allocation1 [shape = 'u32[144,128]{1,0:T(1,128)}', space=vmem, size = 0x12000, scoped, tag = 'internal scratch']
  #allocation2 [shape = 'f32[2,2]{1,0:T(2,128)}', space=vmem, size = 0x400, scoped, tag = 'scratch operand']
  %s0 = inlined_call_operand.hbm [shape: bf16[2,32], index: 0, kind: input, shape index: {}]
  %s1 = inlined_call_operand.hbm [shape: bf16[2,512], index: 1, kind: input, shape index: {}]
  %s2 = inlined_call_operand.hbm [shape: bf16[4,32,128], index: 2, kind: input, shape index: {}]
  %s3 = inlined_call_operand.hbm [shape: bf16[4,512,128], index: 3, kind: input, shape index: {}]
  %s4 = inlined_call_operand.hbm [shape: bf16[4,512,128], index: 4, kind: input, shape index: {}]
  %s5 = inlined_call_operand.hbm [shape: f32[2,512], index: 5, kind: output, shape index: {}]
  %s6 = sld [smem:[#allocation0]]
  $region89: #{tpu_custom_call.1} parent=0
    _
  %s8 = ssub.s32 1, %s6
  %s9 = scalar_select 0, %s8, %s6
  $region1: #{tpu_custom_call.1} parent=0
    #allocation3 [shape = 'u8[512]{0}', space=vmem, size = 0x400, scoped, tag = 'input window, operand 0, single buffered']
    #allocation4 [shape = 's32[2]{0}', space=sflag, size = 0x8, scoped, tag = 'scoped memory for tpu_custom_call.1']
    #allocation5 [shape = 's32[2]{0}', space=sflag, size = 0x8, scoped, tag = 'scoped memory for tpu_custom_call.1']
    #allocation6 [shape = 'u8[2048]{0}', space=vmem, size = 0x800, scoped, tag = 'input window, operand 1, single buffered']
    #allocation7 [shape = 's32[1]{0}', space=sflag, size = 0x4, scoped, tag = 'scoped memory for tpu_custom_call.1']
    #allocation8 [shape = 'u8[16384]{0}', space=vmem, size = 0x4000, scoped, tag = 'input window, operand 2']
    #allocation9 [shape = 'u8[262144]{0}', space=vmem, size = 0x40000, scoped, tag = 'input window, operand 3']
    #allocation10 [shape = 'u8[262144]{0}', space=vmem, size = 0x40000, scoped, tag = 'input window, operand 4']
    #allocation11 [shape = 'u8[2048]{0}', space=vmem, size = 0x800, scoped, tag = 'output window, operand 0']
    %10 = vsyncpa [#allocation4], 0
    %11 = vsyncpa [#allocation7], 0
    %12 = vsyncpa [#allocation5], 0
    %s13 = scalar_lea.sflag [#allocation5], 1
    %14 = vsyncpa %s13, 0
    loop: start=0, step=1, limit=9
    $region2: #{tpu_custom_call.1} parent=1 // loop_pre_header
      _
    $region3: #{tpu_custom_call.1} parent=1 // loop_header
      %s16 = sphi 0, %s20
      %p17 = scmp.ge.s32.totalorder %s16, 9
      %s23 = sphi 0, %s35
      %s24 = sphi 0, %s31
      %s25 = sphi 0, %s23
      %s26 = sphi 0, %s24
      %s27 = sphi 0, %s25
      %s28 = sphi 0, %s26
      %s36 = sphi 0, %s36
      %s38 = sphi 0, %s36
      %s39 = sphi 0, %s38
      %s53 = sphi 0, %s39
      %s57 = sphi 0, %s57
      %s59 = sphi 0, %s57
      %s60 = sphi 0, %s59
      %s74 = sphi 0, %s60
      %s84 = sphi 0, %s86
      %s87 = sphi 0, %s84
      %s88 = sphi 0, %s87
      %s104 = sphi 0, %s88
      %s114 = sphi 0, %s116
      %s117 = sphi 0, %s114
      %s118 = sphi 0, %s117
      %s134 = sphi 0, %s118
      %s150 = sphi 0, %s152
      %s153 = sphi 0, %s150
      %s154 = sphi 0, %s153
      %s170 = sphi 0, %s154
      %s186 = sphi 0, %s188
      %s189 = sphi 0, %s186
      %s190 = sphi 0, %s189
      %s206 = sphi 0, %s190
    $region4: #{tpu_custom_call.1} parent=1 // loop_header_branch
      %19 = sbr.rel (%p17) target = $region8
    $region5: #{tpu_custom_call.1} parent=1 // loop_body
      %s21 = ssub.s32 %s16, 1
      %s22 = ssub.s32 %s16, 2
      %s29 = sadd.s32 1, %s24
      %p30 = scmp.ge.s32.totalorder %s29, 7
      %s31 = scalar_select %p30, 0, %s29
      %s32 = sadd.s32 1, %s23
      %s33 = scalar_select %p30, %s32, %s23
      %p34 = scmp.ge.s32.totalorder %s33, 1
      %s35 = scalar_select %p34, 0, %s33
      %s37 = sadd.s32 %s36, 1
      %p40 = scmp.eq.s32.totalorder %s16, 6
      %p41 = scmp.ne.s32.totalorder %s36, %s38
      %p42 = scmp.eq.s32.totalorder %s16, 0
      %p43 = por %p41, %p42
      %p44 = scmp.ne.s32.totalorder %s36, %s38
      %p45 = scmp.eq.s32.totalorder %s21, 6
      %p46 = por %p44, %p45
      %p47 = scmp.ne.s32.totalorder %s38, %s39
      %p48 = scmp.eq.s32.totalorder %s21, 0
      %p49 = por %p47, %p48
      %p50 = scmp.ne.s32.totalorder %s38, %s39
      %p51 = scmp.eq.s32.totalorder %s22, 6
      %p52 = por %p50, %p51
      %p54 = scmp.ne.s32.totalorder %s39, %s53
      %p55 = scmp.eq.s32.totalorder %s22, 0
      %p56 = por %p54, %p55
      %s58 = sadd.s32 %s57, 1
      %p61 = scmp.eq.s32.totalorder %s16, 6
      %p62 = scmp.ne.s32.totalorder %s57, %s59
      %p63 = scmp.eq.s32.totalorder %s16, 0
      %p64 = por %p62, %p63
      %p65 = scmp.ne.s32.totalorder %s57, %s59
      %p66 = scmp.eq.s32.totalorder %s21, 6
      %p67 = por %p65, %p66
      %p68 = scmp.ne.s32.totalorder %s59, %s60
      %p69 = scmp.eq.s32.totalorder %s21, 0
      %p70 = por %p68, %p69
      %p71 = scmp.ne.s32.totalorder %s59, %s60
      %p72 = scmp.eq.s32.totalorder %s22, 6
      %p73 = por %p71, %p72
      %p75 = scmp.ne.s32.totalorder %s60, %s74
      %p76 = scmp.eq.s32.totalorder %s22, 0
      %p77 = por %p75, %p76
      %p78 = scmp.lt.s32.totalorder %s24, 3
      %s79 = scalar_select %p78, %s24, 3
      %p80 = scmp.lt.s32.totalorder %s31, 3
      %s81 = scalar_select %p80, %s31, 3
      %s82 = ssub.s32 %s79, %s81
      %p83 = scmp.eq.s32.totalorder %s82, 0
      %s85 = sadd.s32 %s84, 1
      %s86 = scalar_select %p83, %s84, %s85
      %p89 = pneg %p83
      %p90 = scmp.eq.s32.totalorder %s16, 6
      %p91 = por %p89, %p90
      %p92 = scmp.ne.s32.totalorder %s84, %s87
      %p93 = scmp.eq.s32.totalorder %s16, 0
      %p94 = por %p92, %p93
      %p95 = scmp.ne.s32.totalorder %s84, %s87
      %p96 = scmp.eq.s32.totalorder %s21, 6
      %p97 = por %p95, %p96
      %p98 = scmp.ne.s32.totalorder %s87, %s88
      %p99 = scmp.eq.s32.totalorder %s21, 0
      %p100 = por %p98, %p99
      %p101 = scmp.ne.s32.totalorder %s87, %s88
      %p102 = scmp.eq.s32.totalorder %s22, 6
      %p103 = por %p101, %p102
      %p105 = scmp.ne.s32.totalorder %s88, %s104
      %p106 = scmp.eq.s32.totalorder %s22, 0
      %p107 = por %p105, %p106
      %p108 = scmp.lt.s32.totalorder %s24, 3
      %s109 = scalar_select %p108, %s24, 3
      %p110 = scmp.lt.s32.totalorder %s31, 3
      %s111 = scalar_select %p110, %s31, 3
      %s112 = ssub.s32 %s109, %s111
      %p113 = scmp.eq.s32.totalorder %s112, 0
      %s115 = sadd.s32 %s114, 1
      %s116 = scalar_select %p113, %s114, %s115
      %p119 = pneg %p113
      %p120 = scmp.eq.s32.totalorder %s16, 6
      %p121 = por %p119, %p120
      %p122 = scmp.ne.s32.totalorder %s114, %s117
      %p123 = scmp.eq.s32.totalorder %s16, 0
      %p124 = por %p122, %p123
      %p125 = scmp.ne.s32.totalorder %s114, %s117
      %p126 = scmp.eq.s32.totalorder %s21, 6
      %p127 = por %p125, %p126
      %p128 = scmp.ne.s32.totalorder %s117, %s118
      %p129 = scmp.eq.s32.totalorder %s21, 0
      %p130 = por %p128, %p129
      %p131 = scmp.ne.s32.totalorder %s117, %s118
      %p132 = scmp.eq.s32.totalorder %s22, 6
      %p133 = por %p131, %p132
      %p135 = scmp.ne.s32.totalorder %s118, %s134
      %p136 = scmp.eq.s32.totalorder %s22, 0
      %p137 = por %p135, %p136
      %s138 = smul.u32 %s23, 4
      %s139 = ssub.s32 %s24, 3
      %p140 = scmp.gt.s32.totalorder %s139, 0
      %s141 = scalar_select %p140, %s139, 0
      %s142 = sadd.s32 %s138, %s141
      %s143 = smul.u32 %s35, 4
      %s144 = ssub.s32 %s31, 3
      %p145 = scmp.gt.s32.totalorder %s144, 0
      %s146 = scalar_select %p145, %s144, 0
      %s147 = sadd.s32 %s143, %s146
      %s148 = ssub.s32 %s142, %s147
      %p149 = scmp.eq.s32.totalorder %s148, 0
      %s151 = sadd.s32 %s150, 1
      %s152 = scalar_select %p149, %s150, %s151
      %p155 = pneg %p149
      %p156 = scmp.eq.s32.totalorder %s16, 6
      %p157 = por %p155, %p156
      %p158 = scmp.ne.s32.totalorder %s150, %s153
      %p159 = scmp.eq.s32.totalorder %s16, 0
      %p160 = por %p158, %p159
      %p161 = scmp.ne.s32.totalorder %s150, %s153
      %p162 = scmp.eq.s32.totalorder %s21, 6
      %p163 = por %p161, %p162
      %p164 = scmp.ne.s32.totalorder %s153, %s154
      %p165 = scmp.eq.s32.totalorder %s21, 0
      %p166 = por %p164, %p165
      %p167 = scmp.ne.s32.totalorder %s153, %s154
      %p168 = scmp.eq.s32.totalorder %s22, 6
      %p169 = por %p167, %p168
      %p171 = scmp.ne.s32.totalorder %s154, %s170
      %p172 = scmp.eq.s32.totalorder %s22, 0
      %p173 = por %p171, %p172
      %s174 = smul.u32 %s23, 4
      %s175 = ssub.s32 %s24, 3
      %p176 = scmp.gt.s32.totalorder %s175, 0
      %s177 = scalar_select %p176, %s175, 0
      %s178 = sadd.s32 %s174, %s177
      %s179 = smul.u32 %s35, 4
      %s180 = ssub.s32 %s31, 3
      %p181 = scmp.gt.s32.totalorder %s180, 0
      %s182 = scalar_select %p181, %s180, 0
      %s183 = sadd.s32 %s179, %s182
      %s184 = ssub.s32 %s178, %s183
      %p185 = scmp.eq.s32.totalorder %s184, 0
      %s187 = sadd.s32 %s186, 1
      %s188 = scalar_select %p185, %s186, %s187
      %p191 = pneg %p185
      %p192 = scmp.eq.s32.totalorder %s16, 6
      %p193 = por %p191, %p192
      %p194 = scmp.ne.s32.totalorder %s186, %s189
      %p195 = scmp.eq.s32.totalorder %s16, 0
      %p196 = por %p194, %p195
      %p197 = scmp.ne.s32.totalorder %s186, %s189
      %p198 = scmp.eq.s32.totalorder %s21, 6
      %p199 = por %p197, %p198
      %p200 = scmp.ne.s32.totalorder %s189, %s190
      %p201 = scmp.eq.s32.totalorder %s21, 0
      %p202 = por %p200, %p201
      %p203 = scmp.ne.s32.totalorder %s189, %s190
      %p204 = scmp.eq.s32.totalorder %s22, 6
      %p205 = por %p203, %p204
      %p207 = scmp.ne.s32.totalorder %s190, %s206
      %p208 = scmp.eq.s32.totalorder %s22, 0
      %p209 = por %p207, %p208
      %p210 = scmp.le.s32.totalorder 1, %s16
      %p211 = scmp.lt.s32.totalorder %s16, 8
      %p212 = pnand %p210, %p211
      %p213 = pneg %p212
      // Predicated region
      $region9: #{tpu_custom_call.1} parent=5 // pred_check
        _
      $region10: #{tpu_custom_call.1} parent=5 // pred_check_branch
        %215 = sbr.rel (%p212) target = $region12
      $region11: #{tpu_custom_call.1} parent=5 // pred_region
        %s216 = ssub.s32 %s16, 1
        // Predicated region
        $region13: #{tpu_custom_call.1} parent=11 // pred_check
          %p217 = pneg %p49
        $region14: #{tpu_custom_call.1} parent=11 // pred_check_branch
          %219 = sbr.rel (%p217) target = $region16
        $region15: #{tpu_custom_call.1} parent=11 // pred_region
          %s221 = ssub.s32 16, 16
          %222 = vsyncadd [#allocation4], %s221
          %s224 = sshll.u32 [#allocation3], 4
          %s225 = int_to_ptr.vmem [resolvable:$true] %s224
          %227 = dma.hbm_to_vmem [thread:$0]  %s0, 16, %s225, [#allocation4]
        $region16: #{tpu_custom_call.1} parent=11 // pred_fallthru
          _
        // Predicated region
        $region17: #{tpu_custom_call.1} parent=11 // pred_check
          %p228 = pneg %p70
        $region18: #{tpu_custom_call.1} parent=11 // pred_check_branch
          %230 = sbr.rel (%p228) target = $region20
        $region19: #{tpu_custom_call.1} parent=11 // pred_region
          %s232 = ssub.s32 64, 64
          %233 = vsyncadd [#allocation7], %s232
          %s235 = sshll.u32 [#allocation6], 4
          %s236 = int_to_ptr.vmem [resolvable:$true] %s235
          %238 = dma.hbm_to_vmem [thread:$0]  %s1, 64, %s236, [#allocation7]
        $region20: #{tpu_custom_call.1} parent=11 // pred_fallthru
          _
      $region12: #{tpu_custom_call.1} parent=5 // pred_fallthru
        _
      %p239 = scmp.lt.s32.totalorder %s16, 7
      // Predicated region
      $region21: #{tpu_custom_call.1} parent=5 // pred_check
        %p240 = pneg %p239
      $region22: #{tpu_custom_call.1} parent=5 // pred_check_branch
        %242 = sbr.rel (%p240) target = $region24
      $region23: #{tpu_custom_call.1} parent=5 // pred_region
        // Predicated region
        $region25: #{tpu_custom_call.1} parent=23 // pred_check
          %p243 = pneg %p94
        $region26: #{tpu_custom_call.1} parent=23 // pred_check_branch
          %245 = sbr.rel (%p243) target = $region28
        $region27: #{tpu_custom_call.1} parent=23 // pred_region
          %s246 = sand.u32 %s16, 1
          %s247 = scalar_lea.sflag [#allocation4], %s246
          %s248 = sand.u32 %s84, 1
          %s249 = smul.addr %s248, 16
          %s250 = scalar_lea.vmem [#allocation8], %s249
          %p251 = scmp.lt.s32.totalorder %s24, 3
          %s252 = scalar_select %p251, %s24, 3
          %s254 = ssub.s32 256, 256
          %255 = vsyncadd %s247, %s254
          %s256 = smul.addr %s252, 4
          %s257 = smul.addr %s256, 64
          %s258 = scalar_lea.hbm %s2, %s257
          %s259 = sshll.u32 %s250, 4
          %s260 = int_to_ptr.vmem [resolvable:$true] %s259
          %265 = dma.hbm_to_vmem [thread:$0]  %s258, 256, %s260, %s247, 64, 64, 4
        $region28: #{tpu_custom_call.1} parent=23 // pred_fallthru
          _
        // Predicated region
        $region29: #{tpu_custom_call.1} parent=23 // pred_check
          %p266 = pneg %p124
        $region30: #{tpu_custom_call.1} parent=23 // pred_check_branch
          %268 = sbr.rel (%p266) target = $region32
        $region31: #{tpu_custom_call.1} parent=23 // pred_region
          %s269 = sand.u32 %s16, 1
          %s270 = scalar_lea.sflag [#allocation4], %s269
          %s271 = sand.u32 %s114, 1
          %s272 = smul.addr %s271, 256
          %s273 = scalar_lea.vmem [#allocation9], %s272
          %p274 = scmp.lt.s32.totalorder %s24, 3
          %s275 = scalar_select %p274, %s24, 3
          %s277 = ssub.s32 4096, 4096
          %278 = vsyncadd %s270, %s277
          %s279 = smul.addr %s275, 64
          %s280 = smul.addr %s279, 64
          %s281 = scalar_lea.hbm %s3, %s280
          %s282 = sshll.u32 %s273, 4
          %s283 = int_to_ptr.vmem [resolvable:$true] %s282
          %288 = dma.hbm_to_vmem [thread:$0]  %s281, 4096, %s283, %s270, 64, 64, 4
        $region32: #{tpu_custom_call.1} parent=23 // pred_fallthru
          _
        // Predicated region
        $region33: #{tpu_custom_call.1} parent=23 // pred_check
          %p289 = pneg %p160
        $region34: #{tpu_custom_call.1} parent=23 // pred_check_branch
          %291 = sbr.rel (%p289) target = $region36
        $region35: #{tpu_custom_call.1} parent=23 // pred_region
          %s292 = sand.u32 %s16, 1
          %s293 = scalar_lea.sflag [#allocation4], %s292
          %s294 = sand.u32 %s150, 1
          %s295 = smul.addr %s294, 256
          %s296 = scalar_lea.vmem [#allocation10], %s295
          %s297 = smul.u32 %s23, 4
          %s298 = ssub.s32 %s24, 3
          %p299 = scmp.gt.s32.totalorder %s298, 0
          %s300 = scalar_select %p299, %s298, 0
          %s301 = sadd.s32 %s297, %s300
          %s303 = ssub.s32 4096, 4096
          %304 = vsyncadd %s293, %s303
          %s305 = smul.addr %s301, 64
          %s306 = smul.addr %s305, 64
          %s307 = scalar_lea.hbm %s4, %s306
          %s308 = sshll.u32 %s296, 4
          %s309 = int_to_ptr.vmem [resolvable:$true] %s308
          %314 = dma.hbm_to_vmem [thread:$0]  %s307, 4096, %s309, %s293, 64, 64, 4
        $region36: #{tpu_custom_call.1} parent=23 // pred_fallthru
          _
      $region24: #{tpu_custom_call.1} parent=5 // pred_fallthru
        _
      %p315 = scmp.le.s32.totalorder 1, %s16
      %p316 = scmp.lt.s32.totalorder %s16, 8
      %p317 = pnand %p315, %p316
      %p318 = pneg %p317
      // Predicated region
      $region37: #{tpu_custom_call.1} parent=5 // pred_check
        _
      $region38: #{tpu_custom_call.1} parent=5 // pred_check_branch
        %320 = sbr.rel (%p317) target = $region40
      $region39: #{tpu_custom_call.1} parent=5 // pred_region
        %s321 = ssub.s32 %s16, 1
        // Predicated region
        $region41: #{tpu_custom_call.1} parent=39 // pred_check
          %p322 = pneg %p49
        $region42: #{tpu_custom_call.1} parent=39 // pred_check_branch
          %324 = sbr.rel (%p322) target = $region44
        $region43: #{tpu_custom_call.1} parent=39 // pred_region
          %325 = dma.done [#allocation4], 16
        $region44: #{tpu_custom_call.1} parent=39 // pred_fallthru
          _
        // Predicated region
        $region45: #{tpu_custom_call.1} parent=39 // pred_check
          %p326 = pneg %p70
        $region46: #{tpu_custom_call.1} parent=39 // pred_check_branch
          %328 = sbr.rel (%p326) target = $region48
        $region47: #{tpu_custom_call.1} parent=39 // pred_region
          %329 = dma.done [#allocation7], 64
        $region48: #{tpu_custom_call.1} parent=39 // pred_fallthru
          _
        %s330 = sand.u32 %s21, 1
        %s331 = scalar_lea.sflag [#allocation4], %s330
        %s332 = sand.u32 %s87, 1
        %s333 = smul.addr %s332, 16
        %s334 = scalar_lea.vmem [#allocation8], %s333
        // Predicated region
        $region49: #{tpu_custom_call.1} parent=39 // pred_check
          %p335 = pneg %p100
        $region50: #{tpu_custom_call.1} parent=39 // pred_check_branch
          %337 = sbr.rel (%p335) target = $region52
        $region51: #{tpu_custom_call.1} parent=39 // pred_region
          %338 = dma.done %s331, 256
        $region52: #{tpu_custom_call.1} parent=39 // pred_fallthru
          _
        %s339 = sand.u32 %s21, 1
        %s340 = scalar_lea.sflag [#allocation4], %s339
        %s341 = sand.u32 %s117, 1
        %s342 = smul.addr %s341, 256
        %s343 = scalar_lea.vmem [#allocation9], %s342
        // Predicated region
        $region53: #{tpu_custom_call.1} parent=39 // pred_check
          %p344 = pneg %p130
        $region54: #{tpu_custom_call.1} parent=39 // pred_check_branch
          %346 = sbr.rel (%p344) target = $region56
        $region55: #{tpu_custom_call.1} parent=39 // pred_region
          %347 = dma.done %s340, 4096
        $region56: #{tpu_custom_call.1} parent=39 // pred_fallthru
          _
        %s348 = sand.u32 %s21, 1
        %s349 = scalar_lea.sflag [#allocation4], %s348
        %s350 = sand.u32 %s153, 1
        %s351 = smul.addr %s350, 256
        %s352 = scalar_lea.vmem [#allocation10], %s351
        // Predicated region
        $region57: #{tpu_custom_call.1} parent=39 // pred_check
          %p353 = pneg %p166
        $region58: #{tpu_custom_call.1} parent=39 // pred_check_branch
          %355 = sbr.rel (%p353) target = $region60
        $region59: #{tpu_custom_call.1} parent=39 // pred_region
          %356 = dma.done %s349, 4096
        $region60: #{tpu_custom_call.1} parent=39 // pred_fallthru
          _
        %p357 = pneg %p49
        %p358 = pneg %p46
        %p359 = pneg %p70
        %p360 = pneg %p67
        %s361 = sand.u32 %s21, 1
        %s362 = scalar_lea.sflag [#allocation4], %s361
        %s363 = sand.u32 %s87, 1
        %s364 = smul.addr %s363, 16
        %s365 = scalar_lea.vmem [#allocation8], %s364
        %p366 = pneg %p100
        %p367 = pneg %p97
        %s368 = sand.u32 %s21, 1
        %s369 = scalar_lea.sflag [#allocation4], %s368
        %s370 = sand.u32 %s117, 1
        %s371 = smul.addr %s370, 256
        %s372 = scalar_lea.vmem [#allocation9], %s371
        %p373 = pneg %p130
        %p374 = pneg %p127
        %s375 = sand.u32 %s21, 1
        %s376 = scalar_lea.sflag [#allocation4], %s375
        %s377 = sand.u32 %s153, 1
        %s378 = smul.addr %s377, 256
        %s379 = scalar_lea.vmem [#allocation10], %s378
        %p380 = pneg %p166
        %p381 = pneg %p163
        %p382 = pneg %p202
        %p383 = pneg %p199
        %s384 = sand.u32 %s189, 1
        %s385 = scalar_lea.sflag [#allocation5], %s384
        %s386 = sand.u32 %s189, 1
        %s387 = smul.addr %s386, 2
        %s388 = scalar_lea.vmem [#allocation11], %s387
        %p389 = scmp.lt.s32.totalorder %s26, 3
        %s390 = scalar_select %p389, %s26, 3
        %p391 = scmp.lt.s32.totalorder %s26, 3
        %s392 = scalar_select %p391, %s26, 3
        %s393 = smul.u32 %s25, 4
        %s394 = ssub.s32 %s26, 3
        %p395 = scmp.gt.s32.totalorder %s394, 0
        %s396 = scalar_select %p395, %s394, 0
        %s397 = sadd.s32 %s393, %s396
        %s398 = smul.u32 %s25, 4
        %s399 = ssub.s32 %s26, 3
        %p400 = scmp.gt.s32.totalorder %s399, 0
        %s401 = scalar_select %p400, %s399, 0
        %s402 = sadd.s32 %s398, %s401
        %p404 = scmp.eq.s32.totalorder %s26, 0
        // Predicated region
        $region61: #{tpu_custom_call.1} parent=39 // pred_check
          %p405 = pneg %p404
        $region62: #{tpu_custom_call.1} parent=39 // pred_check_branch
          %407 = sbr.rel (%p405) target = $region64
        $region63: #{tpu_custom_call.1} parent=39 // pred_region
          %vm408 = vcmask 9216
          %409 = vst.msk [vmem:[#allocation2] sm:$0x3] %vm408, 0.0
        $region64: #{tpu_custom_call.1} parent=39 // pred_fallthru
          _
        %p410 = scmp.lt.s32.totalorder %s26, 4
        // Predicated region
        $region65: #{tpu_custom_call.1} parent=39 // pred_check
          %p411 = pneg %p410
        $region66: #{tpu_custom_call.1} parent=39 // pred_check_branch
          %413 = sbr.rel (%p411) target = $region68
        $region67: #{tpu_custom_call.1} parent=39 // pred_region
          %v414 = vld [vmem:[#allocation3] sm:$0x1]
          %v415 = vld [vmem:[%s334] sm:$0xf]
          %v416 = vld [vmem:[%s334 + $0x4] sm:$0xf]
          %v417 = vld [vmem:[%s334 + $0x8] sm:$0xf]
          %v418 = vld [vmem:[%s334 + $0xc] sm:$0xf]
          %v423 = vunpack.c.l.b16 %v415
          %v424 = vunpack.c.l.b16 %v416
          %v425 = vunpack.c.l.b16 %v417
          %v426 = vunpack.c.l.b16 %v418
          %v427 = vpack.c.b16 %v424, %v423
          %v428 = vpack.c.b16 %v426, %v425
          %vm431 = vcmask 261120
          %v433 = vsel %vm431, %v414, 0
          %435 = vmatprep.subr.bf16.mxu0 0
          %436 = vmatpush1.bf16.msra.mxu0 0
          %437 = vmatprep.subr.bf16.mxu0 0
          %438 = vmatpush1.bf16.msra.mxu0 0
          %439 = vmatprep.subr.bf16.mxu0 0
          %440 = vmatpush1.bf16.msra.mxu0 0
          %441 = vmatprep.subr.bf16.mxu0 0
          %442 = vmatpush1.bf16.msra.mxu0 0
          %443 = vmatprep.subr.bf16.mxu0 0
          %444 = vmatpush1.bf16.msra.mxu0 0
          %445 = vmatprep.subr.bf16.mxu0 0
          %446 = vmatpush1.bf16.msra.mxu0 0
          %447 = vmatprep.subr.bf16.mxu0 0
          %448 = vmatpush1.bf16.msra.mxu0 %v428
          %449 = vmatprep.subr.bf16.mxu0 0
          %450 = vmatpush1.bf16.msra.mxu0 %v427
          %451 = vmatprep.subr.bf16.mxu0 0
          %452 = vmatpush2.bf16.msra.mxu0 0
          %453 = vmatprep.subr.bf16.mxu0 0
          %454 = vmatpush2.bf16.msra.mxu0 0
          %455 = vmatprep.subr.bf16.mxu0 0
          %456 = vmatpush2.bf16.msra.mxu0 0
          %457 = vmatprep.subr.bf16.mxu0 0
          %458 = vmatpush2.bf16.msra.mxu0 0
          %459 = vmatprep.subr.bf16.mxu0 0
          %460 = vmatpush2.bf16.msra.mxu0 0
          %461 = vmatprep.subr.bf16.mxu0 0
          %462 = vmatpush2.bf16.msra.mxu0 0
          %463 = vmatprep.subr.bf16.mxu0 0
          %464 = vmatpush2.bf16.msra.mxu0 0
          %465 = vmatprep.subr.bf16.mxu0 0
          %466 = vmatpush2.bf16.msra.mxu0 0
          %467 = vmatprep.mubr.bf16.mxu0 0
          %468 = vmatmul.mubr.bf16.gmra.mxu0 %v433
          %v469 = vpop.f32.mrf.mxu0
          %v470 = vadd.f32 0.0, %v469
          %v471 = vpop.f32.mrf.mxu0
          %v472 = vpop.f32.mrf.mxu0
          %v473 = vpop.f32.mrf.mxu0
          %474 = vdwg.mxu0
          %v475 = vld [vmem:[#allocation6] sm:$0xf]
          %v476 = vld [vmem:[%s343] sm:$0xf]
          %v477 = vld [vmem:[%s343 + $0x4] sm:$0xf]
          %v478 = vld [vmem:[%s343 + $0x8] sm:$0xf]
          %v479 = vld [vmem:[%s343 + $0xc] sm:$0xf]
          %v480 = vld [vmem:[%s343 + $0x10] sm:$0xf]
          %v481 = vld [vmem:[%s343 + $0x14] sm:$0xf]
          %v482 = vld [vmem:[%s343 + $0x18] sm:$0xf]
          %v483 = vld [vmem:[%s343 + $0x1c] sm:$0xf]
          %v484 = vld [vmem:[%s343 + $0x20] sm:$0xf]
          %v485 = vld [vmem:[%s343 + $0x24] sm:$0xf]
          %v486 = vld [vmem:[%s343 + $0x28] sm:$0xf]
          %v487 = vld [vmem:[%s343 + $0x2c] sm:$0xf]
          %v488 = vld [vmem:[%s343 + $0x30] sm:$0xf]
          %v489 = vld [vmem:[%s343 + $0x34] sm:$0xf]
          %v490 = vld [vmem:[%s343 + $0x38] sm:$0xf]
          %v491 = vld [vmem:[%s343 + $0x3c] sm:$0xf]
          %v492 = vld [vmem:[%s343 + $0x40] sm:$0xf]
          %v493 = vld [vmem:[%s343 + $0x44] sm:$0xf]
          %v494 = vld [vmem:[%s343 + $0x48] sm:$0xf]
          %v495 = vld [vmem:[%s343 + $0x4c] sm:$0xf]
          %v496 = vld [vmem:[%s343 + $0x50] sm:$0xf]
          %v497 = vld [vmem:[%s343 + $0x54] sm:$0xf]
          %v498 = vld [vmem:[%s343 + $0x58] sm:$0xf]
          %v499 = vld [vmem:[%s343 + $0x5c] sm:$0xf]
          %v500 = vld [vmem:[%s343 + $0x60] sm:$0xf]
          %v501 = vld [vmem:[%s343 + $0x64] sm:$0xf]
          %v502 = vld [vmem:[%s343 + $0x68] sm:$0xf]
          %v503 = vld [vmem:[%s343 + $0x6c] sm:$0xf]
          %v504 = vld [vmem:[%s343 + $0x70] sm:$0xf]
          %v505 = vld [vmem:[%s343 + $0x74] sm:$0xf]
          %v506 = vld [vmem:[%s343 + $0x78] sm:$0xf]
          %v507 = vld [vmem:[%s343 + $0x7c] sm:$0xf]
          %v508 = vld [vmem:[%s343 + $0x80] sm:$0xf]
          %v509 = vld [vmem:[%s343 + $0x84] sm:$0xf]
          %v510 = vld [vmem:[%s343 + $0x88] sm:$0xf]
          %v511 = vld [vmem:[%s343 + $0x8c] sm:$0xf]
          %v512 = vld [vmem:[%s343 + $0x90] sm:$0xf]
          %v513 = vld [vmem:[%s343 + $0x94] sm:$0xf]
          %v514 = vld [vmem:[%s343 + $0x98] sm:$0xf]
          %v515 = vld [vmem:[%s343 + $0x9c] sm:$0xf]
          %v516 = vld [vmem:[%s343 + $0xa0] sm:$0xf]
          %v517 = vld [vmem:[%s343 + $0xa4] sm:$0xf]
          %v518 = vld [vmem:[%s343 + $0xa8] sm:$0xf]
          %v519 = vld [vmem:[%s343 + $0xac] sm:$0xf]
          %v520 = vld [vmem:[%s343 + $0xb0] sm:$0xf]
          %v521 = vld [vmem:[%s343 + $0xb4] sm:$0xf]
          %v522 = vld [vmem:[%s343 + $0xb8] sm:$0xf]
          %v523 = vld [vmem:[%s343 + $0xbc] sm:$0xf]
          %v524 = vld [vmem:[%s343 + $0xc0] sm:$0xf]
          %v525 = vld [vmem:[%s343 + $0xc4] sm:$0xf]
          %v526 = vld [vmem:[%s343 + $0xc8] sm:$0xf]
          %v527 = vld [vmem:[%s343 + $0xcc] sm:$0xf]
          %v528 = vld [vmem:[%s343 + $0xd0] sm:$0xf]
          %v529 = vld [vmem:[%s343 + $0xd4] sm:$0xf]
          %v530 = vld [vmem:[%s343 + $0xd8] sm:$0xf]
          %v531 = vld [vmem:[%s343 + $0xdc] sm:$0xf]
          %v532 = vld [vmem:[%s343 + $0xe0] sm:$0xf]
          %v533 = vld [vmem:[%s343 + $0xe4] sm:$0xf]
          %v534 = vld [vmem:[%s343 + $0xe8] sm:$0xf]
          %v535 = vld [vmem:[%s343 + $0xec] sm:$0xf]
          %v536 = vld [vmem:[%s343 + $0xf0] sm:$0xf]
          %v537 = vld [vmem:[%s343 + $0xf4] sm:$0xf]
          %v538 = vld [vmem:[%s343 + $0xf8] sm:$0xf]
          %v539 = vld [vmem:[%s343 + $0xfc] sm:$0xf]
          %v542 = vunpack.c.l.s4 1966171168
          %v543 = vunpack.c.0.s8 %v542
          %v544 = vlaneseq
          %v545 = vshrl.u32 %v544, 7
          %v546 = vsub.s32 %v543, %v545
          %v547 = vrot.slane %v475, %v546
          %v548 = vcombine.high %v547, %v547
          %v550 = vunpack.c.l.s4 1966171168
          %v551 = vunpack.c.0.s8 %v550
          %v552 = vlaneseq
          %v553 = vshrl.u32 %v552, 7
          %v554 = vsub.s32 %v551, %v553
          %v555 = vrot.slane %v547, %v554
          %v557 = vunpack.c.l.s4 1966171168
          %v558 = vunpack.c.0.s8 %v557
          %v559 = vlaneseq
          %v560 = vshrl.u32 %v559, 7
          %v561 = vsub.s32 %v558, %v560
          %v562 = vrot.slane %v548, %v561
          %v563 = vcombine.high %v555, %v555
          %v564 = vcombine.high %v562, %v562
          %v633 = vunpack.c.l.b16 %v476
          %v634 = vunpack.c.l.b16 %v477
          %v635 = vunpack.c.l.b16 %v478
          %v636 = vunpack.c.l.b16 %v479
          %v637 = vunpack.c.l.b16 %v480
          %v638 = vunpack.c.l.b16 %v481
          %v639 = vunpack.c.l.b16 %v482
          %v640 = vunpack.c.l.b16 %v483
          %v641 = vunpack.c.l.b16 %v484
          %v642 = vunpack.c.l.b16 %v485
          %v643 = vunpack.c.l.b16 %v486
          %v644 = vunpack.c.l.b16 %v487
          %v645 = vunpack.c.l.b16 %v488
          %v646 = vunpack.c.l.b16 %v489
          %v647 = vunpack.c.l.b16 %v490
          %v648 = vunpack.c.l.b16 %v491
          %v649 = vunpack.c.l.b16 %v492
          %v650 = vunpack.c.l.b16 %v493
          %v651 = vunpack.c.l.b16 %v494
          %v652 = vunpack.c.l.b16 %v495
          %v653 = vunpack.c.l.b16 %v496
          %v654 = vunpack.c.l.b16 %v497
          %v655 = vunpack.c.l.b16 %v498
          %v656 = vunpack.c.l.b16 %v499
          %v657 = vunpack.c.l.b16 %v500
          %v658 = vunpack.c.l.b16 %v501
          %v659 = vunpack.c.l.b16 %v502
          %v660 = vunpack.c.l.b16 %v503
          %v661 = vunpack.c.l.b16 %v504
          %v662 = vunpack.c.l.b16 %v505
          %v663 = vunpack.c.l.b16 %v506
          %v664 = vunpack.c.l.b16 %v507
          %v665 = vunpack.c.l.b16 %v508
          %v666 = vunpack.c.l.b16 %v509
          %v667 = vunpack.c.l.b16 %v510
          %v668 = vunpack.c.l.b16 %v511
          %v669 = vunpack.c.l.b16 %v512
          %v670 = vunpack.c.l.b16 %v513
          %v671 = vunpack.c.l.b16 %v514
          %v672 = vunpack.c.l.b16 %v515
          %v673 = vunpack.c.l.b16 %v516
          %v674 = vunpack.c.l.b16 %v517
          %v675 = vunpack.c.l.b16 %v518
          %v676 = vunpack.c.l.b16 %v519
          %v677 = vunpack.c.l.b16 %v520
          %v678 = vunpack.c.l.b16 %v521
          %v679 = vunpack.c.l.b16 %v522
          %v680 = vunpack.c.l.b16 %v523
          %v681 = vunpack.c.l.b16 %v524
          %v682 = vunpack.c.l.b16 %v525
          %v683 = vunpack.c.l.b16 %v526
          %v684 = vunpack.c.l.b16 %v527
          %v685 = vunpack.c.l.b16 %v528
          %v686 = vunpack.c.l.b16 %v529
          %v687 = vunpack.c.l.b16 %v530
          %v688 = vunpack.c.l.b16 %v531
          %v689 = vunpack.c.l.b16 %v532
          %v690 = vunpack.c.l.b16 %v533
          %v691 = vunpack.c.l.b16 %v534
          %v692 = vunpack.c.l.b16 %v535
          %v693 = vunpack.c.l.b16 %v536
          %v694 = vunpack.c.l.b16 %v537
          %v695 = vunpack.c.l.b16 %v538
          %v696 = vunpack.c.l.b16 %v539
          %v697 = vpack.c.b16 %v634, %v633
          %v698 = vpack.c.b16 %v636, %v635
          %v699 = vpack.c.b16 %v638, %v637
          %v700 = vpack.c.b16 %v640, %v639
          %v701 = vpack.c.b16 %v642, %v641
          %v702 = vpack.c.b16 %v644, %v643
          %v703 = vpack.c.b16 %v646, %v645
          %v704 = vpack.c.b16 %v648, %v647
          %v705 = vpack.c.b16 %v650, %v649
          %v706 = vpack.c.b16 %v652, %v651
          %v707 = vpack.c.b16 %v654, %v653
          %v708 = vpack.c.b16 %v656, %v655
          %v709 = vpack.c.b16 %v658, %v657
          %v710 = vpack.c.b16 %v660, %v659
          %v711 = vpack.c.b16 %v662, %v661
          %v712 = vpack.c.b16 %v664, %v663
          %v713 = vpack.c.b16 %v666, %v665
          %v714 = vpack.c.b16 %v668, %v667
          %v715 = vpack.c.b16 %v670, %v669
          %v716 = vpack.c.b16 %v672, %v671
          %v717 = vpack.c.b16 %v674, %v673
          %v718 = vpack.c.b16 %v676, %v675
          %v719 = vpack.c.b16 %v678, %v677
          %v720 = vpack.c.b16 %v680, %v679
          %v721 = vpack.c.b16 %v682, %v681
          %v722 = vpack.c.b16 %v684, %v683
          %v723 = vpack.c.b16 %v686, %v685
          %v724 = vpack.c.b16 %v688, %v687
          %v725 = vpack.c.b16 %v690, %v689
          %v726 = vpack.c.b16 %v692, %v691
          %v727 = vpack.c.b16 %v694, %v693
          %v728 = vpack.c.b16 %v696, %v695
          %761 = vmatprep.subr.bf16.mxu0 0
          %762 = vmatpush1.bf16.msra.mxu0 %v704
          %763 = vmatprep.subr.bf16.mxu0 0
          %764 = vmatpush1.bf16.msra.mxu0 %v703
          %765 = vmatprep.subr.bf16.mxu0 0
          %766 = vmatpush1.bf16.msra.mxu0 %v702
          %767 = vmatprep.subr.bf16.mxu0 0
          %768 = vmatpush1.bf16.msra.mxu0 %v701
          %769 = vmatprep.subr.bf16.mxu0 0
          %770 = vmatpush1.bf16.msra.mxu0 %v700
          %771 = vmatprep.subr.bf16.mxu0 0
          %772 = vmatpush1.bf16.msra.mxu0 %v699
          %773 = vmatprep.subr.bf16.mxu0 0
          %774 = vmatpush1.bf16.msra.mxu0 %v698
          %775 = vmatprep.subr.bf16.mxu0 0
          %776 = vmatpush1.bf16.msra.mxu0 %v697
          %777 = vmatprep.subr.bf16.mxu0 0
          %778 = vmatpush2.bf16.msra.mxu0 %v712
          %779 = vmatprep.subr.bf16.mxu0 0
          %780 = vmatpush2.bf16.msra.mxu0 %v711
          %781 = vmatprep.subr.bf16.mxu0 0
          %782 = vmatpush2.bf16.msra.mxu0 %v710
          %783 = vmatprep.subr.bf16.mxu0 0
          %784 = vmatpush2.bf16.msra.mxu0 %v709
          %785 = vmatprep.subr.bf16.mxu0 0
          %786 = vmatpush2.bf16.msra.mxu0 %v708
          %787 = vmatprep.subr.bf16.mxu0 0
          %788 = vmatpush2.bf16.msra.mxu0 %v707
          %789 = vmatprep.subr.bf16.mxu0 0
          %790 = vmatpush2.bf16.msra.mxu0 %v706
          %791 = vmatprep.subr.bf16.mxu0 0
          %792 = vmatpush2.bf16.msra.mxu0 %v705
          %793 = vmatprep.mubr.bf16.mxu0 %v562
          %794 = vmatmul.mubr.bf16.gmra.mxu0 %v555
          %v795 = vpop.f32.mrf.mxu0
          %v796 = vadd.f32 0.0, %v795
          %v797 = vpop.f32.mrf.mxu0
          %v798 = vpop.f32.mrf.mxu0
          %v799 = vpop.f32.mrf.mxu0
          %800 = vdwg.mxu0
          %801 = vmatprep.subr.bf16.mxu0 0
          %802 = vmatpush1.bf16.msra.mxu0 %v720
          %803 = vmatprep.subr.bf16.mxu0 0
          %804 = vmatpush1.bf16.msra.mxu0 %v719
          %805 = vmatprep.subr.bf16.mxu0 0
          %806 = vmatpush1.bf16.msra.mxu0 %v718
          %807 = vmatprep.subr.bf16.mxu0 0
          %808 = vmatpush1.bf16.msra.mxu0 %v717
          %809 = vmatprep.subr.bf16.mxu0 0
          %810 = vmatpush1.bf16.msra.mxu0 %v716
          %811 = vmatprep.subr.bf16.mxu0 0
          %812 = vmatpush1.bf16.msra.mxu0 %v715
          %813 = vmatprep.subr.bf16.mxu0 0
          %814 = vmatpush1.bf16.msra.mxu0 %v714
          %815 = vmatprep.subr.bf16.mxu0 0
          %816 = vmatpush1.bf16.msra.mxu0 %v713
          %817 = vmatprep.subr.bf16.mxu0 0
          %818 = vmatpush2.bf16.msra.mxu0 %v728
          %819 = vmatprep.subr.bf16.mxu0 0
          %820 = vmatpush2.bf16.msra.mxu0 %v727
          %821 = vmatprep.subr.bf16.mxu0 0
          %822 = vmatpush2.bf16.msra.mxu0 %v726
          %823 = vmatprep.subr.bf16.mxu0 0
          %824 = vmatpush2.bf16.msra.mxu0 %v725
          %825 = vmatprep.subr.bf16.mxu0 0
          %826 = vmatpush2.bf16.msra.mxu0 %v724
          %827 = vmatprep.subr.bf16.mxu0 0
          %828 = vmatpush2.bf16.msra.mxu0 %v723
          %829 = vmatprep.subr.bf16.mxu0 0
          %830 = vmatpush2.bf16.msra.mxu0 %v722
          %831 = vmatprep.subr.bf16.mxu0 0
          %832 = vmatpush2.bf16.msra.mxu0 %v721
          %833 = vmatprep.mubr.bf16.mxu0 %v564
          %834 = vmatmul.mubr.bf16.gmra.mxu0 %v563
          %v835 = vpop.f32.mrf.mxu0
          %v836 = vadd.f32 %v796, %v835
          %v837 = vpop.f32.mrf.mxu0
          %v838 = vpop.f32.mrf.mxu0
          %v839 = vpop.f32.mrf.mxu0
          %840 = vdwg.mxu0
          %v841 = vld [vmem:[#allocation2] sm:$0x3]
          %842 = vmatprep.subr.mxu0 0.0
          %843 = vmatpush1.xpose.msra.mxu0 0.0
          %844 = vmatprep.subr.mxu0 0.0
          %845 = vmatpush1.xpose.msra.mxu0 0.0
          %846 = vmatprep.subr.mxu0 0.0
          %847 = vmatpush1.xpose.msra.mxu0 0.0
          %848 = vmatprep.subr.mxu0 0.0
          %849 = vmatpush1.xpose.msra.mxu0 0.0
          %850 = vmatprep.subr.mxu0 0.0
          %851 = vmatpush1.xpose.msra.mxu0 0.0
          %852 = vmatprep.subr.mxu0 0.0
          %853 = vmatpush1.xpose.msra.mxu0 0.0
          %854 = vmatprep.subr.mxu0 0.0
          %855 = vmatpush1.xpose.msra.mxu0 0.0
          %856 = vmatprep.subr.mxu0 0.0
          %857 = vmatpush1.xpose.msra.mxu0 0.0
          %858 = vmatprep.subr.mxu0 0.0
          %859 = vmatpush1.xpose.msra.mxu0 0.0
          %860 = vmatprep.subr.mxu0 0.0
          %861 = vmatpush1.xpose.msra.mxu0 0.0
          %862 = vmatprep.subr.mxu0 0.0
          %863 = vmatpush1.xpose.msra.mxu0 0.0
          %864 = vmatprep.subr.mxu0 0.0
          %865 = vmatpush1.xpose.msra.mxu0 0.0
          %866 = vmatprep.subr.mxu0 0.0
          %867 = vmatpush1.xpose.msra.mxu0 0.0
          %868 = vmatprep.subr.mxu0 0.0
          %869 = vmatpush1.xpose.msra.mxu0 0.0
          %870 = vmatprep.subr.mxu0 0.0
          %871 = vmatpush1.xpose.msra.mxu0 0.0
          %872 = vmatprep.subr.mxu0 0.0
          %873 = vmatpush1.xpose.msra.mxu0 %v836
          %874 = vmatprep.subr.mxu0 0.0
          %875 = vmatpush2.xpose.msra.mxu0 0.0
          %876 = vmatprep.subr.mxu0 0.0
          %877 = vmatpush2.xpose.msra.mxu0 0.0
          %878 = vmatprep.subr.mxu0 0.0
          %879 = vmatpush2.xpose.msra.mxu0 0.0
          %880 = vmatprep.subr.mxu0 0.0
          %881 = vmatpush2.xpose.msra.mxu0 0.0
          %882 = vmatprep.subr.mxu0 0.0
          %883 = vmatpush2.xpose.msra.mxu0 0.0
          %884 = vmatprep.subr.mxu0 0.0
          %885 = vmatpush2.xpose.msra.mxu0 0.0
          %886 = vmatprep.subr.mxu0 0.0
          %887 = vmatpush2.xpose.msra.mxu0 0.0
          %888 = vmatprep.subr.mxu0 0.0
          %889 = vmatpush2.xpose.msra.mxu0 0.0
          %890 = vmatprep.subr.mxu0 0.0
          %891 = vmatpush2.xpose.msra.mxu0 0.0
          %892 = vmatprep.subr.mxu0 0.0
          %893 = vmatpush2.xpose.msra.mxu0 0.0
          %894 = vmatprep.subr.mxu0 0.0
          %895 = vmatpush2.xpose.msra.mxu0 0.0
          %896 = vmatprep.subr.mxu0 0.0
          %897 = vmatpush2.xpose.msra.mxu0 0.0
          %898 = vmatprep.subr.mxu0 0.0
          %899 = vmatpush2.xpose.msra.mxu0 0.0
          %900 = vmatprep.subr.mxu0 0.0
          %901 = vmatpush2.xpose.msra.mxu0 0.0
          %902 = vmatprep.subr.mxu0 0.0
          %903 = vmatpush2.xpose.msra.mxu0 0.0
          %904 = vmatprep.subr.mxu0 0.0
          %905 = vmatpush2.xpose.msra.mxu0 0.0
          %906 = vmatprep.mubr.f32.mxu0 0.0
          %907 = vmatmul.mubr.f32.gmra.mxu0 %v470
          %v908 = vpop.f32.mrf.mxu0
          %v909 = vadd.f32 0.0, %v908
          %v910 = vpop.f32.mrf.mxu0
          %911 = vdwg.mxu0
          %v912 = vadd.f32 %v841, %v909
          %vm913 = vcmask 9216
          %914 = vst.msk [vmem:[#allocation2] sm:$0x3] %vm913, %v912
        $region68: #{tpu_custom_call.1} parent=39 // pred_fallthru
          _
        %p915 = scmp.eq.s32.totalorder %s26, 3
        // Predicated region
        $region69: #{tpu_custom_call.1} parent=39 // pred_check
          %p916 = pneg %p915
        $region70: #{tpu_custom_call.1} parent=39 // pred_check_branch
          %918 = sbr.rel (%p916) target = $region72
        $region71: #{tpu_custom_call.1} parent=39 // pred_region
          %v919 = vld [vmem:[#allocation2] sm:$0x3]
          %v920 = vmul.f32 %v919, 0.044194173
          %vm921 = vcmask 9216
          %v922 = vsel %vm921, %v920, -inf
          %923 = vmax.xlane.f32.xlu0 %v922
          %v924 = vpop.xlane.xlu0 %923
          %v925 = vsub.f32 %v920, %v924
          %v926 = vmul.f32 %v925, 1.442695
          %v927 = vpow.pop %v926
          %v928 = vsel %vm921, %v927, 0.0
          %929 = vadd.xlane.f32.xlu0 %v928
          %v930 = vpop.xlane.xlu0 %929
          %v931 = vrcp.pop %v930
          %v932 = vmul.f32 %v927, %v931
          %933 = vst.msk [vmem:[#allocation2] sm:$0x3] %vm921, %v932
        $region72: #{tpu_custom_call.1} parent=39 // pred_fallthru
          _
        %p934 = scmp.ge.s32.totalorder %s26, 3
        // Predicated region
        $region73: #{tpu_custom_call.1} parent=39 // pred_check
          %p935 = pneg %p934
        $region74: #{tpu_custom_call.1} parent=39 // pred_check_branch
          %937 = sbr.rel (%p935) target = $region76
        $region75: #{tpu_custom_call.1} parent=39 // pred_region
          %v938 = vld [vmem:[#allocation6] sm:$0xf]
          %v939 = vld [vmem:[%s352] sm:$0xf]
          %v940 = vld [vmem:[%s352 + $0x4] sm:$0xf]
          %v941 = vld [vmem:[%s352 + $0x8] sm:$0xf]
          %v942 = vld [vmem:[%s352 + $0xc] sm:$0xf]
          %v943 = vld [vmem:[%s352 + $0x10] sm:$0xf]
          %v944 = vld [vmem:[%s352 + $0x14] sm:$0xf]
          %v945 = vld [vmem:[%s352 + $0x18] sm:$0xf]
          %v946 = vld [vmem:[%s352 + $0x1c] sm:$0xf]
          %v947 = vld [vmem:[%s352 + $0x20] sm:$0xf]
          %v948 = vld [vmem:[%s352 + $0x24] sm:$0xf]
          %v949 = vld [vmem:[%s352 + $0x28] sm:$0xf]
          %v950 = vld [vmem:[%s352 + $0x2c] sm:$0xf]
          %v951 = vld [vmem:[%s352 + $0x30] sm:$0xf]
          %v952 = vld [vmem:[%s352 + $0x34] sm:$0xf]
          %v953 = vld [vmem:[%s352 + $0x38] sm:$0xf]
          %v954 = vld [vmem:[%s352 + $0x3c] sm:$0xf]
          %v955 = vld [vmem:[%s352 + $0x40] sm:$0xf]
          %v956 = vld [vmem:[%s352 + $0x44] sm:$0xf]
          %v957 = vld [vmem:[%s352 + $0x48] sm:$0xf]
          %v958 = vld [vmem:[%s352 + $0x4c] sm:$0xf]
          %v959 = vld [vmem:[%s352 + $0x50] sm:$0xf]
          %v960 = vld [vmem:[%s352 + $0x54] sm:$0xf]
          %v961 = vld [vmem:[%s352 + $0x58] sm:$0xf]
          %v962 = vld [vmem:[%s352 + $0x5c] sm:$0xf]
          %v963 = vld [vmem:[%s352 + $0x60] sm:$0xf]
          %v964 = vld [vmem:[%s352 + $0x64] sm:$0xf]
          %v965 = vld [vmem:[%s352 + $0x68] sm:$0xf]
          %v966 = vld [vmem:[%s352 + $0x6c] sm:$0xf]
          %v967 = vld [vmem:[%s352 + $0x70] sm:$0xf]
          %v968 = vld [vmem:[%s352 + $0x74] sm:$0xf]
          %v969 = vld [vmem:[%s352 + $0x78] sm:$0xf]
          %v970 = vld [vmem:[%s352 + $0x7c] sm:$0xf]
          %v971 = vld [vmem:[%s352 + $0x80] sm:$0xf]
          %v972 = vld [vmem:[%s352 + $0x84] sm:$0xf]
          %v973 = vld [vmem:[%s352 + $0x88] sm:$0xf]
          %v974 = vld [vmem:[%s352 + $0x8c] sm:$0xf]
          %v975 = vld [vmem:[%s352 + $0x90] sm:$0xf]
          %v976 = vld [vmem:[%s352 + $0x94] sm:$0xf]
          %v977 = vld [vmem:[%s352 + $0x98] sm:$0xf]
          %v978 = vld [vmem:[%s352 + $0x9c] sm:$0xf]
          %v979 = vld [vmem:[%s352 + $0xa0] sm:$0xf]
          %v980 = vld [vmem:[%s352 + $0xa4] sm:$0xf]
          %v981 = vld [vmem:[%s352 + $0xa8] sm:$0xf]
          %v982 = vld [vmem:[%s352 + $0xac] sm:$0xf]
          %v983 = vld [vmem:[%s352 + $0xb0] sm:$0xf]
          %v984 = vld [vmem:[%s352 + $0xb4] sm:$0xf]
          %v985 = vld [vmem:[%s352 + $0xb8] sm:$0xf]
          %v986 = vld [vmem:[%s352 + $0xbc] sm:$0xf]
          %v987 = vld [vmem:[%s352 + $0xc0] sm:$0xf]
          %v988 = vld [vmem:[%s352 + $0xc4] sm:$0xf]
          %v989 = vld [vmem:[%s352 + $0xc8] sm:$0xf]
          %v990 = vld [vmem:[%s352 + $0xcc] sm:$0xf]
          %v991 = vld [vmem:[%s352 + $0xd0] sm:$0xf]
          %v992 = vld [vmem:[%s352 + $0xd4] sm:$0xf]
          %v993 = vld [vmem:[%s352 + $0xd8] sm:$0xf]
          %v994 = vld [vmem:[%s352 + $0xdc] sm:$0xf]
          %v995 = vld [vmem:[%s352 + $0xe0] sm:$0xf]
          %v996 = vld [vmem:[%s352 + $0xe4] sm:$0xf]
          %v997 = vld [vmem:[%s352 + $0xe8] sm:$0xf]
          %v998 = vld [vmem:[%s352 + $0xec] sm:$0xf]
          %v999 = vld [vmem:[%s352 + $0xf0] sm:$0xf]
          %v1000 = vld [vmem:[%s352 + $0xf4] sm:$0xf]
          %v1001 = vld [vmem:[%s352 + $0xf8] sm:$0xf]
          %v1002 = vld [vmem:[%s352 + $0xfc] sm:$0xf]
          %v1005 = vunpack.c.l.s4 1966171168
          %v1006 = vunpack.c.0.s8 %v1005
          %v1007 = vlaneseq
          %v1008 = vshrl.u32 %v1007, 7
          %v1009 = vsub.s32 %v1006, %v1008
          %v1010 = vrot.slane %v938, %v1009
          %v1011 = vcombine.high %v1010, %v1010
          %v1013 = vunpack.c.l.s4 1966171168
          %v1014 = vunpack.c.0.s8 %v1013
          %v1015 = vlaneseq
          %v1016 = vshrl.u32 %v1015, 7
          %v1017 = vsub.s32 %v1014, %v1016
          %v1018 = vrot.slane %v1010, %v1017
          %v1020 = vunpack.c.l.s4 1966171168
          %v1021 = vunpack.c.0.s8 %v1020
          %v1022 = vlaneseq
          %v1023 = vshrl.u32 %v1022, 7
          %v1024 = vsub.s32 %v1021, %v1023
          %v1025 = vrot.slane %v1011, %v1024
          %v1026 = vcombine.high %v1018, %v1018
          %v1027 = vcombine.high %v1025, %v1025
          %v1096 = vunpack.c.l.b16 %v939
          %v1097 = vunpack.c.l.b16 %v940
          %v1098 = vunpack.c.l.b16 %v941
          %v1099 = vunpack.c.l.b16 %v942
          %v1100 = vunpack.c.l.b16 %v943
          %v1101 = vunpack.c.l.b16 %v944
          %v1102 = vunpack.c.l.b16 %v945
          %v1103 = vunpack.c.l.b16 %v946
          %v1104 = vunpack.c.l.b16 %v947
          %v1105 = vunpack.c.l.b16 %v948
          %v1106 = vunpack.c.l.b16 %v949
          %v1107 = vunpack.c.l.b16 %v950
          %v1108 = vunpack.c.l.b16 %v951
          %v1109 = vunpack.c.l.b16 %v952
          %v1110 = vunpack.c.l.b16 %v953
          %v1111 = vunpack.c.l.b16 %v954
          %v1112 = vunpack.c.l.b16 %v955
          %v1113 = vunpack.c.l.b16 %v956
          %v1114 = vunpack.c.l.b16 %v957
          %v1115 = vunpack.c.l.b16 %v958
          %v1116 = vunpack.c.l.b16 %v959
          %v1117 = vunpack.c.l.b16 %v960
          %v1118 = vunpack.c.l.b16 %v961
          %v1119 = vunpack.c.l.b16 %v962
          %v1120 = vunpack.c.l.b16 %v963
          %v1121 = vunpack.c.l.b16 %v964
          %v1122 = vunpack.c.l.b16 %v965
          %v1123 = vunpack.c.l.b16 %v966
          %v1124 = vunpack.c.l.b16 %v967
          %v1125 = vunpack.c.l.b16 %v968
          %v1126 = vunpack.c.l.b16 %v969
          %v1127 = vunpack.c.l.b16 %v970
          %v1128 = vunpack.c.l.b16 %v971
          %v1129 = vunpack.c.l.b16 %v972
          %v1130 = vunpack.c.l.b16 %v973
          %v1131 = vunpack.c.l.b16 %v974
          %v1132 = vunpack.c.l.b16 %v975
          %v1133 = vunpack.c.l.b16 %v976
          %v1134 = vunpack.c.l.b16 %v977
          %v1135 = vunpack.c.l.b16 %v978
          %v1136 = vunpack.c.l.b16 %v979
          %v1137 = vunpack.c.l.b16 %v980
          %v1138 = vunpack.c.l.b16 %v981
          %v1139 = vunpack.c.l.b16 %v982
          %v1140 = vunpack.c.l.b16 %v983
          %v1141 = vunpack.c.l.b16 %v984
          %v1142 = vunpack.c.l.b16 %v985
          %v1143 = vunpack.c.l.b16 %v986
          %v1144 = vunpack.c.l.b16 %v987
          %v1145 = vunpack.c.l.b16 %v988
          %v1146 = vunpack.c.l.b16 %v989
          %v1147 = vunpack.c.l.b16 %v990
          %v1148 = vunpack.c.l.b16 %v991
          %v1149 = vunpack.c.l.b16 %v992
          %v1150 = vunpack.c.l.b16 %v993
          %v1151 = vunpack.c.l.b16 %v994
          %v1152 = vunpack.c.l.b16 %v995
          %v1153 = vunpack.c.l.b16 %v996
          %v1154 = vunpack.c.l.b16 %v997
          %v1155 = vunpack.c.l.b16 %v998
          %v1156 = vunpack.c.l.b16 %v999
          %v1157 = vunpack.c.l.b16 %v1000
          %v1158 = vunpack.c.l.b16 %v1001
          %v1159 = vunpack.c.l.b16 %v1002
          %v1160 = vpack.c.b16 %v1097, %v1096
          %v1161 = vpack.c.b16 %v1099, %v1098
          %v1162 = vpack.c.b16 %v1101, %v1100
          %v1163 = vpack.c.b16 %v1103, %v1102
          %v1164 = vpack.c.b16 %v1105, %v1104
          %v1165 = vpack.c.b16 %v1107, %v1106
          %v1166 = vpack.c.b16 %v1109, %v1108
          %v1167 = vpack.c.b16 %v1111, %v1110
          %v1168 = vpack.c.b16 %v1113, %v1112
          %v1169 = vpack.c.b16 %v1115, %v1114
          %v1170 = vpack.c.b16 %v1117, %v1116
          %v1171 = vpack.c.b16 %v1119, %v1118
          %v1172 = vpack.c.b16 %v1121, %v1120
          %v1173 = vpack.c.b16 %v1123, %v1122
          %v1174 = vpack.c.b16 %v1125, %v1124
          %v1175 = vpack.c.b16 %v1127, %v1126
          %v1176 = vpack.c.b16 %v1129, %v1128
          %v1177 = vpack.c.b16 %v1131, %v1130
          %v1178 = vpack.c.b16 %v1133, %v1132
          %v1179 = vpack.c.b16 %v1135, %v1134
          %v1180 = vpack.c.b16 %v1137, %v1136
          %v1181 = vpack.c.b16 %v1139, %v1138
          %v1182 = vpack.c.b16 %v1141, %v1140
          %v1183 = vpack.c.b16 %v1143, %v1142
          %v1184 = vpack.c.b16 %v1145, %v1144
          %v1185 = vpack.c.b16 %v1147, %v1146
          %v1186 = vpack.c.b16 %v1149, %v1148
          %v1187 = vpack.c.b16 %v1151, %v1150
          %v1188 = vpack.c.b16 %v1153, %v1152
          %v1189 = vpack.c.b16 %v1155, %v1154
          %v1190 = vpack.c.b16 %v1157, %v1156
          %v1191 = vpack.c.b16 %v1159, %v1158
          %1224 = vmatprep.subr.bf16.mxu0 0
          %1225 = vmatpush1.bf16.msra.mxu0 %v1167
          %1226 = vmatprep.subr.bf16.mxu0 0
          %1227 = vmatpush1.bf16.msra.mxu0 %v1166
          %1228 = vmatprep.subr.bf16.mxu0 0
          %1229 = vmatpush1.bf16.msra.mxu0 %v1165
          %1230 = vmatprep.subr.bf16.mxu0 0
          %1231 = vmatpush1.bf16.msra.mxu0 %v1164
          %1232 = vmatprep.subr.bf16.mxu0 0
          %1233 = vmatpush1.bf16.msra.mxu0 %v1163
          %1234 = vmatprep.subr.bf16.mxu0 0
          %1235 = vmatpush1.bf16.msra.mxu0 %v1162
          %1236 = vmatprep.subr.bf16.mxu0 0
          %1237 = vmatpush1.bf16.msra.mxu0 %v1161
          %1238 = vmatprep.subr.bf16.mxu0 0
          %1239 = vmatpush1.bf16.msra.mxu0 %v1160
          %1240 = vmatprep.subr.bf16.mxu0 0
          %1241 = vmatpush2.bf16.msra.mxu0 %v1175
          %1242 = vmatprep.subr.bf16.mxu0 0
          %1243 = vmatpush2.bf16.msra.mxu0 %v1174
          %1244 = vmatprep.subr.bf16.mxu0 0
          %1245 = vmatpush2.bf16.msra.mxu0 %v1173
          %1246 = vmatprep.subr.bf16.mxu0 0
          %1247 = vmatpush2.bf16.msra.mxu0 %v1172
          %1248 = vmatprep.subr.bf16.mxu0 0
          %1249 = vmatpush2.bf16.msra.mxu0 %v1171
          %1250 = vmatprep.subr.bf16.mxu0 0
          %1251 = vmatpush2.bf16.msra.mxu0 %v1170
          %1252 = vmatprep.subr.bf16.mxu0 0
          %1253 = vmatpush2.bf16.msra.mxu0 %v1169
          %1254 = vmatprep.subr.bf16.mxu0 0
          %1255 = vmatpush2.bf16.msra.mxu0 %v1168
          %1256 = vmatprep.mubr.bf16.mxu0 %v1025
          %1257 = vmatmul.mubr.bf16.gmra.mxu0 %v1018
          %v1258 = vpop.f32.mrf.mxu0
          %v1259 = vadd.f32 0.0, %v1258
          %v1260 = vpop.f32.mrf.mxu0
          %v1261 = vpop.f32.mrf.mxu0
          %v1262 = vpop.f32.mrf.mxu0
          %1263 = vdwg.mxu0
          %1264 = vmatprep.subr.bf16.mxu0 0
          %1265 = vmatpush1.bf16.msra.mxu0 %v1183
          %1266 = vmatprep.subr.bf16.mxu0 0
          %1267 = vmatpush1.bf16.msra.mxu0 %v1182
          %1268 = vmatprep.subr.bf16.mxu0 0
          %1269 = vmatpush1.bf16.msra.mxu0 %v1181
          %1270 = vmatprep.subr.bf16.mxu0 0
          %1271 = vmatpush1.bf16.msra.mxu0 %v1180
          %1272 = vmatprep.subr.bf16.mxu0 0
          %1273 = vmatpush1.bf16.msra.mxu0 %v1179
          %1274 = vmatprep.subr.bf16.mxu0 0
          %1275 = vmatpush1.bf16.msra.mxu0 %v1178
          %1276 = vmatprep.subr.bf16.mxu0 0
          %1277 = vmatpush1.bf16.msra.mxu0 %v1177
          %1278 = vmatprep.subr.bf16.mxu0 0
          %1279 = vmatpush1.bf16.msra.mxu0 %v1176
          %1280 = vmatprep.subr.bf16.mxu0 0
          %1281 = vmatpush2.bf16.msra.mxu0 %v1191
          %1282 = vmatprep.subr.bf16.mxu0 0
          %1283 = vmatpush2.bf16.msra.mxu0 %v1190
          %1284 = vmatprep.subr.bf16.mxu0 0
          %1285 = vmatpush2.bf16.msra.mxu0 %v1189
          %1286 = vmatprep.subr.bf16.mxu0 0
          %1287 = vmatpush2.bf16.msra.mxu0 %v1188
          %1288 = vmatprep.subr.bf16.mxu0 0
          %1289 = vmatpush2.bf16.msra.mxu0 %v1187
          %1290 = vmatprep.subr.bf16.mxu0 0
          %1291 = vmatpush2.bf16.msra.mxu0 %v1186
          %1292 = vmatprep.subr.bf16.mxu0 0
          %1293 = vmatpush2.bf16.msra.mxu0 %v1185
          %1294 = vmatprep.subr.bf16.mxu0 0
          %1295 = vmatpush2.bf16.msra.mxu0 %v1184
          %1296 = vmatprep.mubr.bf16.mxu0 %v1027
          %1297 = vmatmul.mubr.bf16.gmra.mxu0 %v1026
          %v1298 = vpop.f32.mrf.mxu0
          %v1299 = vadd.f32 %v1259, %v1298
          %v1300 = vpop.f32.mrf.mxu0
          %v1301 = vpop.f32.mrf.mxu0
          %v1302 = vpop.f32.mrf.mxu0
          %1303 = vdwg.mxu0
          %v1304 = vld [vmem:[#allocation2] sm:$0x3]
          %vm1305 = vcmask 15360
          %v1307 = vsel %vm1305, %v1304, 0
          %vm1309 = vcmask 1041408
          %v1311 = vsel %vm1309, %v1299, 0
          %1313 = vmatprep.subr.mxu0 0.0
          %1314 = vmatpush1.msra.mxu0 0.0
          %1315 = vmatprep.subr.mxu0 0.0
          %1316 = vmatpush1.msra.mxu0 0.0
          %1317 = vmatprep.subr.mxu0 0.0
          %1318 = vmatpush1.msra.mxu0 0.0
          %1319 = vmatprep.subr.mxu0 0.0
          %1320 = vmatpush1.msra.mxu0 0.0
          %1321 = vmatprep.subr.mxu0 0.0
          %1322 = vmatpush1.msra.mxu0 0.0
          %1323 = vmatprep.subr.mxu0 0.0
          %1324 = vmatpush1.msra.mxu0 0.0
          %1325 = vmatprep.subr.mxu0 0.0
          %1326 = vmatpush1.msra.mxu0 0.0
          %1327 = vmatprep.subr.mxu0 0.0
          %1328 = vmatpush1.msra.mxu0 0.0
          %1329 = vmatprep.subr.mxu0 0.0
          %1330 = vmatpush1.msra.mxu0 0.0
          %1331 = vmatprep.subr.mxu0 0.0
          %1332 = vmatpush1.msra.mxu0 0.0
          %1333 = vmatprep.subr.mxu0 0.0
          %1334 = vmatpush1.msra.mxu0 0.0
          %1335 = vmatprep.subr.mxu0 0.0
          %1336 = vmatpush1.msra.mxu0 0.0
          %1337 = vmatprep.subr.mxu0 0.0
          %1338 = vmatpush1.msra.mxu0 0.0
          %1339 = vmatprep.subr.mxu0 0.0
          %1340 = vmatpush1.msra.mxu0 0.0
          %1341 = vmatprep.subr.mxu0 0.0
          %1342 = vmatpush1.msra.mxu0 0.0
          %1343 = vmatprep.subr.mxu0 0.0
          %1344 = vmatpush1.msra.mxu0 %v1311
          %1345 = vmatprep.subr.mxu0 0.0
          %1346 = vmatpush2.msra.mxu0 0.0
          %1347 = vmatprep.subr.mxu0 0.0
          %1348 = vmatpush2.msra.mxu0 0.0
          %1349 = vmatprep.subr.mxu0 0.0
          %1350 = vmatpush2.msra.mxu0 0.0
          %1351 = vmatprep.subr.mxu0 0.0
          %1352 = vmatpush2.msra.mxu0 0.0
          %1353 = vmatprep.subr.mxu0 0.0
          %1354 = vmatpush2.msra.mxu0 0.0
          %1355 = vmatprep.subr.mxu0 0.0
          %1356 = vmatpush2.msra.mxu0 0.0
          %1357 = vmatprep.subr.mxu0 0.0
          %1358 = vmatpush2.msra.mxu0 0.0
          %1359 = vmatprep.subr.mxu0 0.0
          %1360 = vmatpush2.msra.mxu0 0.0
          %1361 = vmatprep.subr.mxu0 0.0
          %1362 = vmatpush2.msra.mxu0 0.0
          %1363 = vmatprep.subr.mxu0 0.0
          %1364 = vmatpush2.msra.mxu0 0.0
          %1365 = vmatprep.subr.mxu0 0.0
          %1366 = vmatpush2.msra.mxu0 0.0
          %1367 = vmatprep.subr.mxu0 0.0
          %1368 = vmatpush2.msra.mxu0 0.0
          %1369 = vmatprep.subr.mxu0 0.0
          %1370 = vmatpush2.msra.mxu0 0.0
          %1371 = vmatprep.subr.mxu0 0.0
          %1372 = vmatpush2.msra.mxu0 0.0
          %1373 = vmatprep.subr.mxu0 0.0
          %1374 = vmatpush2.msra.mxu0 0.0
          %1375 = vmatprep.subr.mxu0 0.0
          %1376 = vmatpush2.msra.mxu0 0.0
          %1377 = vmatprep.mubr.f32.mxu0 0.0
          %1378 = vmatmul.mubr.f32.gmra.mxu0 %v1307
          %v1379 = vpop.f32.mrf.mxu0
          %v1380 = vadd.f32 0.0, %v1379
          %v1381 = vpop.f32.mrf.mxu0
          %1382 = vdwg.mxu0
          %1383 = vst [vmem:[%s388] sm:$0x3] %v1380
        $region76: #{tpu_custom_call.1} parent=39 // pred_fallthru
          _
        %s1384 = sand.u32 %s189, 1
        %s1385 = scalar_lea.sflag [#allocation5], %s1384
        %s1386 = sand.u32 %s189, 1
        %s1387 = smul.addr %s1386, 2
        %s1388 = scalar_lea.vmem [#allocation11], %s1387
        // Predicated region
        $region77: #{tpu_custom_call.1} parent=39 // pred_check
          %p1389 = pneg %p199
        $region78: #{tpu_custom_call.1} parent=39 // pred_check_branch
          %1391 = sbr.rel (%p1389) target = $region80
        $region79: #{tpu_custom_call.1} parent=39 // pred_region
          %s1392 = smul.u32 %s25, 4
          %s1393 = ssub.s32 %s26, 3
          %p1394 = scmp.gt.s32.totalorder %s1393, 0
          %s1395 = scalar_select %p1394, %s1393, 0
          %s1396 = sadd.s32 %s1392, %s1395
          %s1398 = ssub.s32 32, 32
          %1399 = vsyncadd %s1385, %s1398
          %s1400 = smul.addr %s1396, 32
          %s1401 = scalar_lea.hbm %s5, %s1400
          %s1403 = sshll.u32 %s1388, 4
          %s1404 = int_to_ptr.vmem [resolvable:$true] %s1403
          %1406 = dma.vmem_to_hbm [thread:$0]  %s1404, 32, %s1401, %s1385
        $region80: #{tpu_custom_call.1} parent=39 // pred_fallthru
          _
      $region40: #{tpu_custom_call.1} parent=5 // pred_fallthru
        _
      %p1407 = scmp.le.s32.totalorder 2, %s16
      // Predicated region
      $region81: #{tpu_custom_call.1} parent=5 // pred_check
        %p1408 = pneg %p1407
      $region82: #{tpu_custom_call.1} parent=5 // pred_check_branch
        %1410 = sbr.rel (%p1408) target = $region84
      $region83: #{tpu_custom_call.1} parent=5 // pred_region
        %s1411 = ssub.s32 %s16, 2
        // Predicated region
        $region85: #{tpu_custom_call.1} parent=83 // pred_check
          %p1412 = pneg %p205
        $region86: #{tpu_custom_call.1} parent=83 // pred_check_branch
          %1414 = sbr.rel (%p1412) target = $region88
        $region87: #{tpu_custom_call.1} parent=83 // pred_region
          %s1415 = sand.u32 %s190, 1
          %s1416 = scalar_lea.sflag [#allocation5], %s1415
          %s1417 = sand.u32 %s190, 1
          %s1418 = smul.addr %s1417, 2
          %s1419 = scalar_lea.vmem [#allocation11], %s1418
          %1420 = dma.done %s1416, 32
        $region88: #{tpu_custom_call.1} parent=83 // pred_fallthru
          _
      $region84: #{tpu_custom_call.1} parent=5 // pred_fallthru
        _
    $region6: #{tpu_custom_call.1} parent=1 // loop_footer
      %s20 = sadd.s32 1, %s16
    $region7: #{tpu_custom_call.1} parent=1 // loop_footer_branch
      %15 = sbr.rel target = $region3
    $region8: #{tpu_custom_call.1} parent=1 // loop_exit
      _
    %1421 = vsyncpa [#allocation4], 1
    %s1422 = scalar_lea.sflag [#allocation4], 1
    %1423 = vsyncpa %s1422, 1
    %1424 = vsyncpa [#allocation7], 1
    %1425 = vsyncpa [#allocation5], 1
    %s1426 = scalar_lea.sflag [#allocation5], 1
    %1427 = vsyncpa %s1426, 1

</llo_original>
